<compile_context>
chip_gen: v7x
topology: tpu7x:2x2x1
jax: 0.10.0
libtpu: 0.0.40
codegen_flags: <defaults>
</compile_context>

<pallas_src>
import jax
import jax.numpy as jnp
from jax.experimental import pallas as pl
from jax.experimental.pallas import tpu as pltpu


def _round_up(x, m):
    return (x + m - 1) // m * m


def gru_chunk_kernel(emb_ref,        # (T_CHUNK, B_BLK, E_pad)  embedded tokens, time-major
                     wih_ref,        # (E_pad, 3*H_pad)         fused input->gate weights [r|z|n]
                     bfold_ref,      # (1, 3*H_pad)             b_ir+b_hr | b_iz+b_hz | b_in
                     whh_ref,        # (H_pad, 3*H_pad)         fused hidden->gate weights (bf16/f32)
                     bhn_ref,        # (1, H_pad)               b_hn (must stay inside r * (...))
                     hs_ref,         # (T_CHUNK, B_BLK, H_pad)  per-step hidden outputs
                     gates_scratch,  # VMEM (T_CHUNK, B_BLK, 3*H_pad) f32
                     h_scratch):     # VMEM (B_BLK, H_pad) f32, carried across time chunks
    t_chunk, b_blk, e_pad = emb_ref.shape
    h_pad = whh_ref.shape[0]
    g3 = wih_ref.shape[1]

    # New batch block (time-chunk index 0) -> reset the carried hidden state.
    @pl.when(pl.program_id(1) == 0)
    def _():
        h_scratch[...] = jnp.zeros_like(h_scratch)

    # ---- Input projection for the whole chunk: one big MXU matmul, off the
    # serial critical path.  The foldable biases are already in bfold.
    emb2d = emb_ref[...].reshape(t_chunk * b_blk, e_pad)
    gi = jnp.dot(emb2d, wih_ref[...], preferred_element_type=jnp.float32)
    gates_scratch[...] = gi.reshape(t_chunk, b_blk, g3) + bfold_ref[...]

    # Loop-invariant hidden weights; bf16 operands halve the MXU push traffic on
    # the recurrence critical path (Mosaic hoists the invariant RHS push).
    whh = whh_ref[...]
    bhn = bhn_ref[...]
    mm_dtype = whh.dtype

    # PyTorch GRU gate equations (gate order r, z, n):
    #   r = sigmoid(gi_r + W_hr h)
    #   z = sigmoid(gi_z + W_hz h)
    #   n = tanh   (gi_n + r * (W_hn h + b_hn))
    #   h = (1 - z) * n + z * h_prev
    def step(t, h_prev):
        g = gates_scratch[t]                                           # (B_BLK, 3*H_pad) f32
        hg = jnp.dot(h_prev.astype(mm_dtype), whh,
                     preferred_element_type=jnp.float32)
        r = jax.nn.sigmoid(g[:, :h_pad] + hg[:, :h_pad])
        z = jax.nn.sigmoid(g[:, h_pad:2 * h_pad] + hg[:, h_pad:2 * h_pad])
        n = jnp.tanh(g[:, 2 * h_pad:] + r * (hg[:, 2 * h_pad:] + bhn))
        h_new = (1.0 - z) * n + z * h_prev
        hs_ref[t] = h_new
        return h_new

    # Partial unroll keeps LLO scheduling visibility without blowing up code
    # size / vreg pressure for large chunks.
    h_final = jax.lax.fori_loop(0, t_chunk, step, h_scratch[...], unroll=8)
    h_scratch[...] = h_final


def gru_pallas(emb_tbe, wih_fused, b_fold, whh_fused, bhn, *, t_chunk, b_block):
    """Fused input-projection + GRU recurrence.

    emb_tbe:   (T_pad, B_pad, E_pad) f32, time-major, already padded.
    wih_fused: (E_pad, 3*H_pad) f32.       b_fold: (1, 3*H_pad) f32.
    whh_fused: (H_pad, 3*H_pad) bf16/f32.  bhn:    (1, H_pad)   f32.
    Returns hs: (T_pad, B_pad, H_pad) f32 (time-major).
    """
    T_pad, B_pad, E_pad = emb_tbe.shape
    H_pad = whh_fused.shape[0]
    G3 = wih_fused.shape[1]
    T_CHUNK, B_BLK = t_chunk, b_block
    assert T_pad % T_CHUNK == 0 and B_pad % B_BLK == 0
    n_bblk = B_pad // B_BLK
    n_chunks = T_pad // T_CHUNK

    # Explicit VMEM budget: actual need with margin, capped at 48 MiB so we
    # never request all of v7x's 64 MiB physical VMEM.
    hh_bytes = jnp.dtype(whh_fused.dtype).itemsize
    need = (2 * T_CHUNK * B_BLK * E_pad * 4                         # emb blocks (dbl-buffered)
            + 2 * T_CHUNK * B_BLK * H_pad * 4                       # hs blocks (dbl-buffered)
            + 2 * (E_pad * G3 * 4 + G3 * 4 + H_pad * G3 * hh_bytes + H_pad * 4)
            + T_CHUNK * B_BLK * G3 * 4                              # gates scratch
            + B_BLK * H_pad * 4)                                    # h scratch
    vmem_limit = int(min(max(int(1.5 * need), 16 * 1024 * 1024), 48 * 1024 * 1024))

    return pl.pallas_call(
        gru_chunk_kernel,
        out_shape=jax.ShapeDtypeStruct((T_pad, B_pad, H_pad), jnp.float32),
        grid_spec=pltpu.PrefetchScalarGridSpec(
            num_scalar_prefetch=0,
            grid=(n_bblk, n_chunks),
            in_specs=[
                pl.BlockSpec((T_CHUNK, B_BLK, E_pad), lambda b, c: (c, b, 0)),
                pl.BlockSpec((E_pad, G3), lambda b, c: (0, 0)),
                pl.BlockSpec((1, G3), lambda b, c: (0, 0)),
                pl.BlockSpec((H_pad, G3), lambda b, c: (0, 0)),
                pl.BlockSpec((1, H_pad), lambda b, c: (0, 0)),
            ],
            out_specs=pl.BlockSpec((T_CHUNK, B_BLK, H_pad), lambda b, c: (c, b, 0)),
            scratch_shapes=[
                pltpu.VMEM((T_CHUNK, B_BLK, G3), jnp.float32),
                pltpu.VMEM((B_BLK, H_pad), jnp.float32),
            ],
        ),
        compiler_params=pltpu.CompilerParams(
            # Batch blocks are independent -> "parallel" (2 TCs on v7x);
            # time chunks carry the recurrence -> "arbitrary".
            dimension_semantics=("parallel", "arbitrary"),
            vmem_limit_bytes=vmem_limit),
    )(emb_tbe, wih_fused, b_fold, whh_fused, bhn)


def encoder_forward(sequence, params, *, t_chunk=256, b_block=256,
                    hh_dtype=jnp.bfloat16):
    """sequence: (B, T) int32 token ids.  Returns (hs, h) like the PyTorch module:
       hs: (B, T, H) batch_first, h: (1, B, H)."""
    emb_table = params["embedding"]                 # (V, E), row pad_idx is zero
    w_ih, w_hh = params["w_ih"], params["w_hh"]     # (3H, E), (3H, H)
    b_ih, b_hh = params["b_ih"], params["b_hh"]     # (3H,), (3H,)
    V, E = emb_table.shape
    H = w_hh.shape[1]
    B, T = sequence.shape

    # Lane/sublane-dense padded sizes.  Padding is folded into the tiny
    # weights / biases / embedding table and the int32 id matrix — never into a
    # full-size activation pass.
    E_pad = _round_up(max(E, 128), 128)
    H_pad = _round_up(max(H, 128), 128)
    B_BLK = min(_round_up(max(B, 8), 8), _round_up(b_block, 8))
    B_pad = _round_up(max(B, 8), B_BLK)
    n_chunks = max(1, -(-T // t_chunk))             # cdiv
    T_CHUNK = _round_up(-(-T // n_chunks), 8)
    T_pad = n_chunks * T_CHUNK
    G3 = 3 * H_pad

    # Embedding gather directly in time-major, lane-padded layout: column-pad
    # the (tiny) table, pad the id matrix, gather once.  Padded rows/timesteps
    # are sliced off below and cannot contaminate valid outputs.
    emb_pad_table = jnp.pad(emb_table, ((0, 0), (0, E_pad - E)))
    seq_pad = jnp.pad(sequence.astype(jnp.int32), ((0, B_pad - B), (0, T_pad - T)))
    emb_tbe = jnp.take(emb_pad_table, seq_pad.T, axis=0)      # (T_pad, B_pad, E_pad)

    # Fused + per-gate-padded weights (zero padding keeps padded lanes exactly 0).
    def g_blocks(m):
        return m[:H], m[H:2 * H], m[2 * H:]

    wih_fused = jnp.concatenate(
        [jnp.pad(g.T, ((0, E_pad - E), (0, H_pad - H))) for g in g_blocks(w_ih)],
        axis=1).astype(jnp.float32)                           # (E_pad, 3*H_pad)
    whh_fused = jnp.concatenate(
        [jnp.pad(g.T, ((0, H_pad - H), (0, H_pad - H))) for g in g_blocks(w_hh)],
        axis=1).astype(hh_dtype)                              # (H_pad, 3*H_pad)

    def pad_b(v):
        return jnp.pad(v, (0, H_pad - H))

    # Foldable biases (b_ir+b_hr, b_iz+b_hz, b_in); b_hn must stay inside r*(...).
    b_fold = jnp.concatenate([pad_b(b_ih[:H] + b_hh[:H]),
                              pad_b(b_ih[H:2 * H] + b_hh[H:2 * H]),
                              pad_b(b_ih[2 * H:])]).reshape(1, G3)
    bhn = pad_b(b_hh[2 * H:]).reshape(1, H_pad)

    hs_pad = gru_pallas(emb_tbe, wih_fused, b_fold, whh_fused, bhn,
                        t_chunk=T_CHUNK, b_block=B_BLK)       # (T_pad, B_pad, H_pad)

    hs_tbh = hs_pad[:T, :B, :H]
    # NOTE: emitting hs batch-first from the kernel would save this transpose's
    # HBM round trip but makes the per-step store sublane-strided; keep the
    # cheap wrapper transpose unless hs dominates the profile.
    hs = jnp.transpose(hs_tbh, (1, 0, 2))                     # (B, T, H) batch_first
    h = hs_tbh[T - 1][None]                                   # (1, B, H)
    return hs, h


def gru_reference(x_tbe, w_ih, w_hh, b_ih, b_hh):
    """Pure-JAX reference of the same GRU, for verification."""
    T, B, E = x_tbe.shape
    H = w_hh.shape[1]

    def step(h, x):
        gi = x @ w_ih.T + b_ih
        gh = h @ w_hh.T + b_hh
        i_r, i_z, i_n = gi[:, :H], gi[:, H:2 * H], gi[:, 2 * H:]
        h_r, h_z, h_n = gh[:, :H], gh[:, H:2 * H], gh[:, 2 * H:]
        r = jax.nn.sigmoid(i_r + h_r)
        z = jax.nn.sigmoid(i_z + h_z)
        n = jnp.tanh(i_n + r * h_n)
        h_new = (1.0 - z) * n + z * h
        return h_new, h_new

    h0 = jnp.zeros((B, H), jnp.float32)
    h_last, hs = jax.lax.scan(step, h0, x_tbe)
    return hs, h_last


if __name__ == "__main__":
    # Shapes consistent with Encoder(vocab_size, embedding_dim, hidden_dim, pad_idx).
    vocab_size, embedding_dim, hidden_dim, pad_idx = 20, 8, 32, 0

    key = jax.random.PRNGKey(0)
    k_emb, k_wih, k_whh, k_bih, k_bhh, k_seq = jax.random.split(key, 6)

    embedding = jax.random.normal(k_emb, (vocab_size, embedding_dim), jnp.float32) * 0.1
    embedding = embedding.at[pad_idx].set(0.0)   # padding_idx row is zero

    params = {
        "embedding": embedding,
        "w_ih": jax.random.normal(k_wih, (3 * hidden_dim, embedding_dim), jnp.float32) * 0.1,
        "w_hh": jax.random.normal(k_whh, (3 * hidden_dim, hidden_dim), jnp.float32) * 0.1,
        "b_ih": jax.random.normal(k_bih, (3 * hidden_dim,), jnp.float32) * 0.1,
        "b_hh": jax.random.normal(k_bhh, (3 * hidden_dim,), jnp.float32) * 0.1,
    }

    def check(sequence, atol, **kw):
        hs, h = encoder_forward(sequence, params, **kw)
        jax.block_until_ready((hs, h))
        emb = jnp.take(params["embedding"], sequence, axis=0)
        hs_ref, h_ref = gru_reference(jnp.transpose(emb, (1, 0, 2)),
                                      params["w_ih"], params["w_hh"],
                                      params["b_ih"], params["b_hh"])
        hs_ref = jnp.transpose(hs_ref, (1, 0, 2))
        B, T = sequence.shape
        assert hs.shape == (B, T, hidden_dim)
        assert h.shape == (1, B, hidden_dim)
        err_hs = float(jnp.max(jnp.abs(hs - hs_ref)))
        err_h = float(jnp.max(jnp.abs(h[0] - h_ref)))
        assert err_hs < atol, err_hs
        assert err_h < atol, err_h

    # 1) Tiny shapes, f32 hidden matmul path: tight tolerance, single chunk.
    seq1 = jax.random.randint(k_seq, (2, 8), 0, vocab_size, jnp.int32)
    check(seq1, atol=1e-3, hh_dtype=jnp.float32)

    # 2) Longer / ragged sequence, multi-chunk grid (3 chunks, T padded 40->48),
    #    default bf16 matmul operands.
    seq2 = jax.random.randint(jax.random.PRNGKey(1), (3, 40), 0, vocab_size, jnp.int32)
    check(seq2, atol=2e-2, t_chunk=16)

    # 3) Batch padding + two batch blocks (exercises the parallel batch grid axis).
    seq3 = jax.random.randint(jax.random.PRNGKey(2), (10, 12), 0, vocab_size, jnp.int32)
    check(seq3, atol=2e-2, b_block=8)

    print("KERNEL_OK")
</pallas_src>

<mosaic_0001>
module attributes {stable_mosaic.version = 11 : i64} {
  func.func @gru_chunk_kernel(%arg0: i32, %arg1: i32, %arg2: memref<8x8x128xf32, #tpu.memory_space<vmem>>, %arg3: memref<128x384xf32, #tpu.memory_space<vmem>>, %arg4: memref<1x384xf32, #tpu.memory_space<vmem>>, %arg5: memref<128x384xf32, #tpu.memory_space<vmem>>, %arg6: memref<1x128xf32, #tpu.memory_space<vmem>>, %arg7: memref<8x8x128xf32, #tpu.memory_space<vmem>>, %arg8: memref<8x8x384xf32, #tpu.memory_space<vmem>>, %arg9: memref<8x128xf32, #tpu.memory_space<vmem>>) attributes {dimension_semantics = [#tpu.dimension_semantics<parallel>, #tpu.dimension_semantics<arbitrary>], iteration_bounds = array<i64: 1, 1>, scalar_prefetch = 0 : i64, scratch_operands = 2 : i64, tpu.core_type = #tpu.core_type<tc>, window_params = [{transform_indices = @transform_0, window_bounds = array<i64: 8, 8, 128>}, {pipeline_mode = #tpu.pipeline_mode<synchronous>, transform_indices = @transform_1, window_bounds = array<i64: 128, 384>}, {pipeline_mode = #tpu.pipeline_mode<synchronous>, transform_indices = @transform_2, window_bounds = array<i64: 1, 384>}, {pipeline_mode = #tpu.pipeline_mode<synchronous>, transform_indices = @transform_3, window_bounds = array<i64: 128, 384>}, {pipeline_mode = #tpu.pipeline_mode<synchronous>, transform_indices = @transform_4, window_bounds = array<i64: 1, 128>}, {transform_indices = @transform_5, window_bounds = array<i64: 8, 8, 128>}]} {
    %c0_i32 = arith.constant 0 : i32
    %0 = arith.cmpi eq, %arg1, %c0_i32 : i32
    %1 = arith.extui %0 : i1 to i32
    %c0_i32_0 = arith.constant 0 : i32
    %2 = arith.cmpi ne, %1, %c0_i32_0 : i32
    scf.if %2 {
      %cst_83 = arith.constant 0.000000e+00 : f32
      %305 = vector.broadcast %cst_83 : f32 to vector<8x128xf32>
      %c0_84 = arith.constant 0 : index
      %c0_85 = arith.constant 0 : index
      %306 = vector.load %arg9[%c0_84, %c0_85] : memref<8x128xf32, #tpu.memory_space<vmem>>, vector<8x128xf32>
      tpu.vector_store %arg9[%c0_84, %c0_85], %305 {strides = array<i32>} : memref<8x128xf32, #tpu.memory_space<vmem>>, vector<8x128xf32>,
    } else {
    }
    %c0 = arith.constant 0 : index
    %c0_1 = arith.constant 0 : index
    %c0_2 = arith.constant 0 : index
    %3 = vector.load %arg2[%c0, %c0_1, %c0_2] : memref<8x8x128xf32, #tpu.memory_space<vmem>>, vector<8x8x128xf32>
    %4 = vector.shape_cast %3 : vector<8x8x128xf32> to vector<64x128xf32>
    %c0_3 = arith.constant 0 : index
    %c0_4 = arith.constant 0 : index
    %5 = vector.load %arg3[%c0_3, %c0_4] : memref<128x384xf32, #tpu.memory_space<vmem>>, vector<128x384xf32>
    %cst = arith.constant dense<0.000000e+00> : vector<64x384xf32>
    %6 = tpu.matmul %4, %5, %cst {dimension_numbers = #tpu.dot_dimension_numbers<[1], [0], [0], [1], [0, 0, 1, 1], [], []>} : vector<64x128xf32>, vector<128x384xf32>, vector<64x384xf32> -> vector<64x384xf32>
    %7 = vector.shape_cast %6 : vector<64x384xf32> to vector<8x8x384xf32>
    %c0_5 = arith.constant 0 : index
    %c0_6 = arith.constant 0 : index
    %8 = vector.load %arg4[%c0_5, %c0_6] : memref<1x384xf32, #tpu.memory_space<vmem>>, vector<1x384xf32>
    %9 = vector.shape_cast %8 : vector<1x384xf32> to vector<1x1x384xf32>
    %10 = vector.broadcast %9 : vector<1x1x384xf32> to vector<8x8x384xf32>
    %11 = arith.addf %7, %10 : vector<8x8x384xf32>
    %c0_7 = arith.constant 0 : index
    %c0_8 = arith.constant 0 : index
    %c0_9 = arith.constant 0 : index
    %12 = vector.load %arg8[%c0_7, %c0_8, %c0_9] : memref<8x8x384xf32, #tpu.memory_space<vmem>>, vector<8x8x384xf32>
    tpu.vector_store %arg8[%c0_7, %c0_8, %c0_9], %11 {strides = array<i32>} : memref<8x8x384xf32, #tpu.memory_space<vmem>>, vector<8x8x384xf32>,
    %c0_10 = arith.constant 0 : index
    %c0_11 = arith.constant 0 : index
    %13 = vector.load %arg5[%c0_10, %c0_11] : memref<128x384xf32, #tpu.memory_space<vmem>>, vector<128x384xf32>
    %c0_12 = arith.constant 0 : index
    %c0_13 = arith.constant 0 : index
    %14 = vector.load %arg6[%c0_12, %c0_13] : memref<1x128xf32, #tpu.memory_space<vmem>>, vector<1x128xf32>
    %c0_14 = arith.constant 0 : index
    %c0_15 = arith.constant 0 : index
    %15 = vector.load %arg9[%c0_14, %c0_15] : memref<8x128xf32, #tpu.memory_space<vmem>>, vector<8x128xf32>
    %c0_i32_16 = arith.constant 0 : i32
    %16 = arith.index_cast %c0_i32_16 : i32 to index
    %c0_17 = arith.constant 0 : index
    %c0_18 = arith.constant 0 : index
    %17 = vector.load %arg8[%16, %c0_17, %c0_18] : memref<8x8x384xf32, #tpu.memory_space<vmem>>, vector<1x8x384xf32>
    %18 = vector.shape_cast %17 : vector<1x8x384xf32> to vector<8x384xf32>
    %cst_19 = arith.constant dense<0.000000e+00> : vector<8x384xf32>
    %19 = tpu.matmul %15, %13, %cst_19 {dimension_numbers = #tpu.dot_dimension_numbers<[1], [0], [0], [1], [0, 0, 1, 1], [], []>} : vector<8x128xf32>, vector<128x384xf32>, vector<8x384xf32> -> vector<8x384xf32>
    %20 = vector.extract_strided_slice %18 {offsets = [0, 0], sizes = [8, 128], strides = [1, 1]} : vector<8x384xf32> to vector<8x128xf32>
    %21 = vector.extract_strided_slice %19 {offsets = [0, 0], sizes = [8, 128], strides = [1, 1]} : vector<8x384xf32> to vector<8x128xf32>
    %22 = arith.addf %20, %21 : vector<8x128xf32>
    %23 = arith.negf %22 : vector<8x128xf32>
    %24 = math.exp %23 : vector<8x128xf32>
    %cst_20 = arith.constant 1.000000e+00 : f32
    %25 = vector.broadcast %cst_20 : f32 to vector<8x128xf32>
    %26 = arith.addf %25, %24 : vector<8x128xf32>
    %27 = arith.divf %25, %26 : vector<8x128xf32>
    %28 = vector.extract_strided_slice %18 {offsets = [0, 128], sizes = [8, 128], strides = [1, 1]} : vector<8x384xf32> to vector<8x128xf32>
    %29 = vector.extract_strided_slice %19 {offsets = [0, 128], sizes = [8, 128], strides = [1, 1]} : vector<8x384xf32> to vector<8x128xf32>
    %30 = arith.addf %28, %29 : vector<8x128xf32>
    %31 = arith.negf %30 : vector<8x128xf32>
    %32 = math.exp %31 : vector<8x128xf32>
    %cst_21 = arith.constant 1.000000e+00 : f32
    %33 = vector.broadcast %cst_21 : f32 to vector<8x128xf32>
    %34 = arith.addf %33, %32 : vector<8x128xf32>
    %35 = arith.divf %33, %34 : vector<8x128xf32>
    %36 = vector.extract_strided_slice %18 {offsets = [0, 256], sizes = [8, 128], strides = [1, 1]} : vector<8x384xf32> to vector<8x128xf32>
    %37 = vector.extract_strided_slice %19 {offsets = [0, 256], sizes = [8, 128], strides = [1, 1]} : vector<8x384xf32> to vector<8x128xf32>
    %38 = vector.broadcast %14 : vector<1x128xf32> to vector<8x128xf32>
    %39 = arith.addf %37, %38 : vector<8x128xf32>
    %40 = arith.mulf %27, %39 : vector<8x128xf32>
    %41 = arith.addf %36, %40 : vector<8x128xf32>
    %42 = math.tanh %41 : vector<8x128xf32>
    %cst_22 = arith.constant 1.000000e+00 : f32
    %43 = vector.broadcast %cst_22 : f32 to vector<8x128xf32>
    %44 = arith.subf %43, %35 : vector<8x128xf32>
    %45 = arith.mulf %44, %42 : vector<8x128xf32>
    %46 = arith.mulf %35, %15 : vector<8x128xf32>
    %47 = arith.addf %45, %46 : vector<8x128xf32>
    %48 = arith.index_cast %c0_i32_16 : i32 to index
    %c0_23 = arith.constant 0 : index
    %c0_24 = arith.constant 0 : index
    %49 = vector.load %arg7[%48, %c0_23, %c0_24] : memref<8x8x128xf32, #tpu.memory_space<vmem>>, vector<1x8x128xf32>
    %50 = vector.shape_cast %49 : vector<1x8x128xf32> to vector<8x128xf32>
    %51 = vector.shape_cast %47 : vector<8x128xf32> to vector<1x8x128xf32>
    tpu.vector_store %arg7[%48, %c0_23, %c0_24], %51 {strides = array<i32>} : memref<8x8x128xf32, #tpu.memory_space<vmem>>, vector<1x8x128xf32>,
    %c1_i32 = arith.constant 1 : i32
    %52 = arith.index_cast %c1_i32 : i32 to index
    %c0_25 = arith.constant 0 : index
    %c0_26 = arith.constant 0 : index
    %53 = vector.load %arg8[%52, %c0_25, %c0_26] : memref<8x8x384xf32, #tpu.memory_space<vmem>>, vector<1x8x384xf32>
    %54 = vector.shape_cast %53 : vector<1x8x384xf32> to vector<8x384xf32>
    %cst_27 = arith.constant dense<0.000000e+00> : vector<8x384xf32>
    %55 = tpu.matmul %47, %13, %cst_27 {dimension_numbers = #tpu.dot_dimension_numbers<[1], [0], [0], [1], [0, 0, 1, 1], [], []>} : vector<8x128xf32>, vector<128x384xf32>, vector<8x384xf32> -> vector<8x384xf32>
    %56 = vector.extract_strided_slice %54 {offsets = [0, 0], sizes = [8, 128], strides = [1, 1]} : vector<8x384xf32> to vector<8x128xf32>
    %57 = vector.extract_strided_slice %55 {offsets = [0, 0], sizes = [8, 128], strides = [1, 1]} : vector<8x384xf32> to vector<8x128xf32>
    %58 = arith.addf %56, %57 : vector<8x128xf32>
    %59 = arith.negf %58 : vector<8x128xf32>
    %60 = math.exp %59 : vector<8x128xf32>
    %cst_28 = arith.constant 1.000000e+00 : f32
    %61 = vector.broadcast %cst_28 : f32 to vector<8x128xf32>
    %62 = arith.addf %61, %60 : vector<8x128xf32>
    %63 = arith.divf %61, %62 : vector<8x128xf32>
    %64 = vector.extract_strided_slice %54 {offsets = [0, 128], sizes = [8, 128], strides = [1, 1]} : vector<8x384xf32> to vector<8x128xf32>
    %65 = vector.extract_strided_slice %55 {offsets = [0, 128], sizes = [8, 128], strides = [1, 1]} : vector<8x384xf32> to vector<8x128xf32>
    %66 = arith.addf %64, %65 : vector<8x128xf32>
    %67 = arith.negf %66 : vector<8x128xf32>
    %68 = math.exp %67 : vector<8x128xf32>
    %cst_29 = arith.constant 1.000000e+00 : f32
    %69 = vector.broadcast %cst_29 : f32 to vector<8x128xf32>
    %70 = arith.addf %69, %68 : vector<8x128xf32>
    %71 = arith.divf %69, %70 : vector<8x128xf32>
    %72 = vector.extract_strided_slice %54 {offsets = [0, 256], sizes = [8, 128], strides = [1, 1]} : vector<8x384xf32> to vector<8x128xf32>
    %73 = vector.extract_strided_slice %55 {offsets = [0, 256], sizes = [8, 128], strides = [1, 1]} : vector<8x384xf32> to vector<8x128xf32>
    %74 = vector.broadcast %14 : vector<1x128xf32> to vector<8x128xf32>
    %75 = arith.addf %73, %74 : vector<8x128xf32>
    %76 = arith.mulf %63, %75 : vector<8x128xf32>
    %77 = arith.addf %72, %76 : vector<8x128xf32>
    %78 = math.tanh %77 : vector<8x128xf32>
    %cst_30 = arith.constant 1.000000e+00 : f32
    %79 = vector.broadcast %cst_30 : f32 to vector<8x128xf32>
    %80 = arith.subf %79, %71 : vector<8x128xf32>
    %81 = arith.mulf %80, %78 : vector<8x128xf32>
    %82 = arith.mulf %71, %47 : vector<8x128xf32>
    %83 = arith.addf %81, %82 : vector<8x128xf32>
    %84 = arith.index_cast %c1_i32 : i32 to index
    %c0_31 = arith.constant 0 : index
    %c0_32 = arith.constant 0 : index
    %85 = vector.load %arg7[%84, %c0_31, %c0_32] : memref<8x8x128xf32, #tpu.memory_space<vmem>>, vector<1x8x128xf32>
    %86 = vector.shape_cast %85 : vector<1x8x128xf32> to vector<8x128xf32>
    %87 = vector.shape_cast %83 : vector<8x128xf32> to vector<1x8x128xf32>
    tpu.vector_store %arg7[%84, %c0_31, %c0_32], %87 {strides = array<i32>} : memref<8x8x128xf32, #tpu.memory_space<vmem>>, vector<1x8x128xf32>,
    %c2_i32 = arith.constant 2 : i32
    %88 = arith.index_cast %c2_i32 : i32 to index
    %c0_33 = arith.constant 0 : index
    %c0_34 = arith.constant 0 : index
    %89 = vector.load %arg8[%88, %c0_33, %c0_34] : memref<8x8x384xf32, #tpu.memory_space<vmem>>, vector<1x8x384xf32>
    %90 = vector.shape_cast %89 : vector<1x8x384xf32> to vector<8x384xf32>
    %cst_35 = arith.constant dense<0.000000e+00> : vector<8x384xf32>
    %91 = tpu.matmul %83, %13, %cst_35 {dimension_numbers = #tpu.dot_dimension_numbers<[1], [0], [0], [1], [0, 0, 1, 1], [], []>} : vector<8x128xf32>, vector<128x384xf32>, vector<8x384xf32> -> vector<8x384xf32>
    %92 = vector.extract_strided_slice %90 {offsets = [0, 0], sizes = [8, 128], strides = [1, 1]} : vector<8x384xf32> to vector<8x128xf32>
    %93 = vector.extract_strided_slice %91 {offsets = [0, 0], sizes = [8, 128], strides = [1, 1]} : vector<8x384xf32> to vector<8x128xf32>
    %94 = arith.addf %92, %93 : vector<8x128xf32>
    %95 = arith.negf %94 : vector<8x128xf32>
    %96 = math.exp %95 : vector<8x128xf32>
    %cst_36 = arith.constant 1.000000e+00 : f32
    %97 = vector.broadcast %cst_36 : f32 to vector<8x128xf32>
    %98 = arith.addf %97, %96 : vector<8x128xf32>
    %99 = arith.divf %97, %98 : vector<8x128xf32>
    %100 = vector.extract_strided_slice %90 {offsets = [0, 128], sizes = [8, 128], strides = [1, 1]} : vector<8x384xf32> to vector<8x128xf32>
    %101 = vector.extract_strided_slice %91 {offsets = [0, 128], sizes = [8, 128], strides = [1, 1]} : vector<8x384xf32> to vector<8x128xf32>
    %102 = arith.addf %100, %101 : vector<8x128xf32>
    %103 = arith.negf %102 : vector<8x128xf32>
    %104 = math.exp %103 : vector<8x128xf32>
    %cst_37 = arith.constant 1.000000e+00 : f32
    %105 = vector.broadcast %cst_37 : f32 to vector<8x128xf32>
    %106 = arith.addf %105, %104 : vector<8x128xf32>
    %107 = arith.divf %105, %106 : vector<8x128xf32>
    %108 = vector.extract_strided_slice %90 {offsets = [0, 256], sizes = [8, 128], strides = [1, 1]} : vector<8x384xf32> to vector<8x128xf32>
    %109 = vector.extract_strided_slice %91 {offsets = [0, 256], sizes = [8, 128], strides = [1, 1]} : vector<8x384xf32> to vector<8x128xf32>
    %110 = vector.broadcast %14 : vector<1x128xf32> to vector<8x128xf32>
    %111 = arith.addf %109, %110 : vector<8x128xf32>
    %112 = arith.mulf %99, %111 : vector<8x128xf32>
    %113 = arith.addf %108, %112 : vector<8x128xf32>
    %114 = math.tanh %113 : vector<8x128xf32>
    %cst_38 = arith.constant 1.000000e+00 : f32
    %115 = vector.broadcast %cst_38 : f32 to vector<8x128xf32>
    %116 = arith.subf %115, %107 : vector<8x128xf32>
    %117 = arith.mulf %116, %114 : vector<8x128xf32>
    %118 = arith.mulf %107, %83 : vector<8x128xf32>
    %119 = arith.addf %117, %118 : vector<8x128xf32>
    %120 = arith.index_cast %c2_i32 : i32 to index
    %c0_39 = arith.constant 0 : index
    %c0_40 = arith.constant 0 : index
    %121 = vector.load %arg7[%120, %c0_39, %c0_40] : memref<8x8x128xf32, #tpu.memory_space<vmem>>, vector<1x8x128xf32>
    %122 = vector.shape_cast %121 : vector<1x8x128xf32> to vector<8x128xf32>
    %123 = vector.shape_cast %119 : vector<8x128xf32> to vector<1x8x128xf32>
    tpu.vector_store %arg7[%120, %c0_39, %c0_40], %123 {strides = array<i32>} : memref<8x8x128xf32, #tpu.memory_space<vmem>>, vector<1x8x128xf32>,
    %c3_i32 = arith.constant 3 : i32
    %124 = arith.index_cast %c3_i32 : i32 to index
    %c0_41 = arith.constant 0 : index
    %c0_42 = arith.constant 0 : index
    %125 = vector.load %arg8[%124, %c0_41, %c0_42] : memref<8x8x384xf32, #tpu.memory_space<vmem>>, vector<1x8x384xf32>
    %126 = vector.shape_cast %125 : vector<1x8x384xf32> to vector<8x384xf32>
    %cst_43 = arith.constant dense<0.000000e+00> : vector<8x384xf32>
    %127 = tpu.matmul %119, %13, %cst_43 {dimension_numbers = #tpu.dot_dimension_numbers<[1], [0], [0], [1], [0, 0, 1, 1], [], []>} : vector<8x128xf32>, vector<128x384xf32>, vector<8x384xf32> -> vector<8x384xf32>
    %128 = vector.extract_strided_slice %126 {offsets = [0, 0], sizes = [8, 128], strides = [1, 1]} : vector<8x384xf32> to vector<8x128xf32>
    %129 = vector.extract_strided_slice %127 {offsets = [0, 0], sizes = [8, 128], strides = [1, 1]} : vector<8x384xf32> to vector<8x128xf32>
    %130 = arith.addf %128, %129 : vector<8x128xf32>
    %131 = arith.negf %130 : vector<8x128xf32>
    %132 = math.exp %131 : vector<8x128xf32>
    %cst_44 = arith.constant 1.000000e+00 : f32
    %133 = vector.broadcast %cst_44 : f32 to vector<8x128xf32>
    %134 = arith.addf %133, %132 : vector<8x128xf32>
    %135 = arith.divf %133, %134 : vector<8x128xf32>
    %136 = vector.extract_strided_slice %126 {offsets = [0, 128], sizes = [8, 128], strides = [1, 1]} : vector<8x384xf32> to vector<8x128xf32>
    %137 = vector.extract_strided_slice %127 {offsets = [0, 128], sizes = [8, 128], strides = [1, 1]} : vector<8x384xf32> to vector<8x128xf32>
    %138 = arith.addf %136, %137 : vector<8x128xf32>
    %139 = arith.negf %138 : vector<8x128xf32>
    %140 = math.exp %139 : vector<8x128xf32>
    %cst_45 = arith.constant 1.000000e+00 : f32
    %141 = vector.broadcast %cst_45 : f32 to vector<8x128xf32>
    %142 = arith.addf %141, %140 : vector<8x128xf32>
    %143 = arith.divf %141, %142 : vector<8x128xf32>
    %144 = vector.extract_strided_slice %126 {offsets = [0, 256], sizes = [8, 128], strides = [1, 1]} : vector<8x384xf32> to vector<8x128xf32>
    %145 = vector.extract_strided_slice %127 {offsets = [0, 256], sizes = [8, 128], strides = [1, 1]} : vector<8x384xf32> to vector<8x128xf32>
    %146 = vector.broadcast %14 : vector<1x128xf32> to vector<8x128xf32>
    %147 = arith.addf %145, %146 : vector<8x128xf32>
    %148 = arith.mulf %135, %147 : vector<8x128xf32>
    %149 = arith.addf %144, %148 : vector<8x128xf32>
    %150 = math.tanh %149 : vector<8x128xf32>
    %cst_46 = arith.constant 1.000000e+00 : f32
    %151 = vector.broadcast %cst_46 : f32 to vector<8x128xf32>
    %152 = arith.subf %151, %143 : vector<8x128xf32>
    %153 = arith.mulf %152, %150 : vector<8x128xf32>
    %154 = arith.mulf %143, %119 : vector<8x128xf32>
    %155 = arith.addf %153, %154 : vector<8x128xf32>
    %156 = arith.index_cast %c3_i32 : i32 to index
    %c0_47 = arith.constant 0 : index
    %c0_48 = arith.constant 0 : index
    %157 = vector.load %arg7[%156, %c0_47, %c0_48] : memref<8x8x128xf32, #tpu.memory_space<vmem>>, vector<1x8x128xf32>
    %158 = vector.shape_cast %157 : vector<1x8x128xf32> to vector<8x128xf32>
    %159 = vector.shape_cast %155 : vector<8x128xf32> to vector<1x8x128xf32>
    tpu.vector_store %arg7[%156, %c0_47, %c0_48], %159 {strides = array<i32>} : memref<8x8x128xf32, #tpu.memory_space<vmem>>, vector<1x8x128xf32>,
    %c4_i32 = arith.constant 4 : i32
    %160 = arith.index_cast %c4_i32 : i32 to index
    %c0_49 = arith.constant 0 : index
    %c0_50 = arith.constant 0 : index
    %161 = vector.load %arg8[%160, %c0_49, %c0_50] : memref<8x8x384xf32, #tpu.memory_space<vmem>>, vector<1x8x384xf32>
    %162 = vector.shape_cast %161 : vector<1x8x384xf32> to vector<8x384xf32>
    %cst_51 = arith.constant dense<0.000000e+00> : vector<8x384xf32>
    %163 = tpu.matmul %155, %13, %cst_51 {dimension_numbers = #tpu.dot_dimension_numbers<[1], [0], [0], [1], [0, 0, 1, 1], [], []>} : vector<8x128xf32>, vector<128x384xf32>, vector<8x384xf32> -> vector<8x384xf32>
    %164 = vector.extract_strided_slice %162 {offsets = [0, 0], sizes = [8, 128], strides = [1, 1]} : vector<8x384xf32> to vector<8x128xf32>
    %165 = vector.extract_strided_slice %163 {offsets = [0, 0], sizes = [8, 128], strides = [1, 1]} : vector<8x384xf32> to vector<8x128xf32>
    %166 = arith.addf %164, %165 : vector<8x128xf32>
    %167 = arith.negf %166 : vector<8x128xf32>
    %168 = math.exp %167 : vector<8x128xf32>
    %cst_52 = arith.constant 1.000000e+00 : f32
    %169 = vector.broadcast %cst_52 : f32 to vector<8x128xf32>
    %170 = arith.addf %169, %168 : vector<8x128xf32>
    %171 = arith.divf %169, %170 : vector<8x128xf32>
    %172 = vector.extract_strided_slice %162 {offsets = [0, 128], sizes = [8, 128], strides = [1, 1]} : vector<8x384xf32> to vector<8x128xf32>
    %173 = vector.extract_strided_slice %163 {offsets = [0, 128], sizes = [8, 128], strides = [1, 1]} : vector<8x384xf32> to vector<8x128xf32>
    %174 = arith.addf %172, %173 : vector<8x128xf32>
    %175 = arith.negf %174 : vector<8x128xf32>
    %176 = math.exp %175 : vector<8x128xf32>
    %cst_53 = arith.constant 1.000000e+00 : f32
    %177 = vector.broadcast %cst_53 : f32 to vector<8x128xf32>
    %178 = arith.addf %177, %176 : vector<8x128xf32>
    %179 = arith.divf %177, %178 : vector<8x128xf32>
    %180 = vector.extract_strided_slice %162 {offsets = [0, 256], sizes = [8, 128], strides = [1, 1]} : vector<8x384xf32> to vector<8x128xf32>
    %181 = vector.extract_strided_slice %163 {offsets = [0, 256], sizes = [8, 128], strides = [1, 1]} : vector<8x384xf32> to vector<8x128xf32>
    %182 = vector.broadcast %14 : vector<1x128xf32> to vector<8x128xf32>
    %183 = arith.addf %181, %182 : vector<8x128xf32>
    %184 = arith.mulf %171, %183 : vector<8x128xf32>
    %185 = arith.addf %180, %184 : vector<8x128xf32>
    %186 = math.tanh %185 : vector<8x128xf32>
    %cst_54 = arith.constant 1.000000e+00 : f32
    %187 = vector.broadcast %cst_54 : f32 to vector<8x128xf32>
    %188 = arith.subf %187, %179 : vector<8x128xf32>
    %189 = arith.mulf %188, %186 : vector<8x128xf32>
    %190 = arith.mulf %179, %155 : vector<8x128xf32>
    %191 = arith.addf %189, %190 : vector<8x128xf32>
    %192 = arith.index_cast %c4_i32 : i32 to index
    %c0_55 = arith.constant 0 : index
    %c0_56 = arith.constant 0 : index
    %193 = vector.load %arg7[%192, %c0_55, %c0_56] : memref<8x8x128xf32, #tpu.memory_space<vmem>>, vector<1x8x128xf32>
    %194 = vector.shape_cast %193 : vector<1x8x128xf32> to vector<8x128xf32>
    %195 = vector.shape_cast %191 : vector<8x128xf32> to vector<1x8x128xf32>
    tpu.vector_store %arg7[%192, %c0_55, %c0_56], %195 {strides = array<i32>} : memref<8x8x128xf32, #tpu.memory_space<vmem>>, vector<1x8x128xf32>,
    %c5_i32 = arith.constant 5 : i32
    %196 = arith.index_cast %c5_i32 : i32 to index
    %c0_57 = arith.constant 0 : index
    %c0_58 = arith.constant 0 : index
    %197 = vector.load %arg8[%196, %c0_57, %c0_58] : memref<8x8x384xf32, #tpu.memory_space<vmem>>, vector<1x8x384xf32>
    %198 = vector.shape_cast %197 : vector<1x8x384xf32> to vector<8x384xf32>
    %cst_59 = arith.constant dense<0.000000e+00> : vector<8x384xf32>
    %199 = tpu.matmul %191, %13, %cst_59 {dimension_numbers = #tpu.dot_dimension_numbers<[1], [0], [0], [1], [0, 0, 1, 1], [], []>} : vector<8x128xf32>, vector<128x384xf32>, vector<8x384xf32> -> vector<8x384xf32>
    %200 = vector.extract_strided_slice %198 {offsets = [0, 0], sizes = [8, 128], strides = [1, 1]} : vector<8x384xf32> to vector<8x128xf32>
    %201 = vector.extract_strided_slice %199 {offsets = [0, 0], sizes = [8, 128], strides = [1, 1]} : vector<8x384xf32> to vector<8x128xf32>
    %202 = arith.addf %200, %201 : vector<8x128xf32>
    %203 = arith.negf %202 : vector<8x128xf32>
    %204 = math.exp %203 : vector<8x128xf32>
    %cst_60 = arith.constant 1.000000e+00 : f32
    %205 = vector.broadcast %cst_60 : f32 to vector<8x128xf32>
    %206 = arith.addf %205, %204 : vector<8x128xf32>
    %207 = arith.divf %205, %206 : vector<8x128xf32>
    %208 = vector.extract_strided_slice %198 {offsets = [0, 128], sizes = [8, 128], strides = [1, 1]} : vector<8x384xf32> to vector<8x128xf32>
    %209 = vector.extract_strided_slice %199 {offsets = [0, 128], sizes = [8, 128], strides = [1, 1]} : vector<8x384xf32> to vector<8x128xf32>
    %210 = arith.addf %208, %209 : vector<8x128xf32>
    %211 = arith.negf %210 : vector<8x128xf32>
    %212 = math.exp %211 : vector<8x128xf32>
    %cst_61 = arith.constant 1.000000e+00 : f32
    %213 = vector.broadcast %cst_61 : f32 to vector<8x128xf32>
    %214 = arith.addf %213, %212 : vector<8x128xf32>
    %215 = arith.divf %213, %214 : vector<8x128xf32>
    %216 = vector.extract_strided_slice %198 {offsets = [0, 256], sizes = [8, 128], strides = [1, 1]} : vector<8x384xf32> to vector<8x128xf32>
    %217 = vector.extract_strided_slice %199 {offsets = [0, 256], sizes = [8, 128], strides = [1, 1]} : vector<8x384xf32> to vector<8x128xf32>
    %218 = vector.broadcast %14 : vector<1x128xf32> to vector<8x128xf32>
    %219 = arith.addf %217, %218 : vector<8x128xf32>
    %220 = arith.mulf %207, %219 : vector<8x128xf32>
    %221 = arith.addf %216, %220 : vector<8x128xf32>
    %222 = math.tanh %221 : vector<8x128xf32>
    %cst_62 = arith.constant 1.000000e+00 : f32
    %223 = vector.broadcast %cst_62 : f32 to vector<8x128xf32>
    %224 = arith.subf %223, %215 : vector<8x128xf32>
    %225 = arith.mulf %224, %222 : vector<8x128xf32>
    %226 = arith.mulf %215, %191 : vector<8x128xf32>
    %227 = arith.addf %225, %226 : vector<8x128xf32>
    %228 = arith.index_cast %c5_i32 : i32 to index
    %c0_63 = arith.constant 0 : index
    %c0_64 = arith.constant 0 : index
    %229 = vector.load %arg7[%228, %c0_63, %c0_64] : memref<8x8x128xf32, #tpu.memory_space<vmem>>, vector<1x8x128xf32>
    %230 = vector.shape_cast %229 : vector<1x8x128xf32> to vector<8x128xf32>
    %231 = vector.shape_cast %227 : vector<8x128xf32> to vector<1x8x128xf32>
    tpu.vector_store %arg7[%228, %c0_63, %c0_64], %231 {strides = array<i32>} : memref<8x8x128xf32, #tpu.memory_space<vmem>>, vector<1x8x128xf32>,
    %c6_i32 = arith.constant 6 : i32
    %232 = arith.index_cast %c6_i32 : i32 to index
    %c0_65 = arith.constant 0 : index
    %c0_66 = arith.constant 0 : index
    %233 = vector.load %arg8[%232, %c0_65, %c0_66] : memref<8x8x384xf32, #tpu.memory_space<vmem>>, vector<1x8x384xf32>
    %234 = vector.shape_cast %233 : vector<1x8x384xf32> to vector<8x384xf32>
    %cst_67 = arith.constant dense<0.000000e+00> : vector<8x384xf32>
    %235 = tpu.matmul %227, %13, %cst_67 {dimension_numbers = #tpu.dot_dimension_numbers<[1], [0], [0], [1], [0, 0, 1, 1], [], []>} : vector<8x128xf32>, vector<128x384xf32>, vector<8x384xf32> -> vector<8x384xf32>
    %236 = vector.extract_strided_slice %234 {offsets = [0, 0], sizes = [8, 128], strides = [1, 1]} : vector<8x384xf32> to vector<8x128xf32>
    %237 = vector.extract_strided_slice %235 {offsets = [0, 0], sizes = [8, 128], strides = [1, 1]} : vector<8x384xf32> to vector<8x128xf32>
    %238 = arith.addf %236, %237 : vector<8x128xf32>
    %239 = arith.negf %238 : vector<8x128xf32>
    %240 = math.exp %239 : vector<8x128xf32>
    %cst_68 = arith.constant 1.000000e+00 : f32
    %241 = vector.broadcast %cst_68 : f32 to vector<8x128xf32>
    %242 = arith.addf %241, %240 : vector<8x128xf32>
    %243 = arith.divf %241, %242 : vector<8x128xf32>
    %244 = vector.extract_strided_slice %234 {offsets = [0, 128], sizes = [8, 128], strides = [1, 1]} : vector<8x384xf32> to vector<8x128xf32>
    %245 = vector.extract_strided_slice %235 {offsets = [0, 128], sizes = [8, 128], strides = [1, 1]} : vector<8x384xf32> to vector<8x128xf32>
    %246 = arith.addf %244, %245 : vector<8x128xf32>
    %247 = arith.negf %246 : vector<8x128xf32>
    %248 = math.exp %247 : vector<8x128xf32>
    %cst_69 = arith.constant 1.000000e+00 : f32
    %249 = vector.broadcast %cst_69 : f32 to vector<8x128xf32>
    %250 = arith.addf %249, %248 : vector<8x128xf32>
    %251 = arith.divf %249, %250 : vector<8x128xf32>
    %252 = vector.extract_strided_slice %234 {offsets = [0, 256], sizes = [8, 128], strides = [1, 1]} : vector<8x384xf32> to vector<8x128xf32>
    %253 = vector.extract_strided_slice %235 {offsets = [0, 256], sizes = [8, 128], strides = [1, 1]} : vector<8x384xf32> to vector<8x128xf32>
    %254 = vector.broadcast %14 : vector<1x128xf32> to vector<8x128xf32>
    %255 = arith.addf %253, %254 : vector<8x128xf32>
    %256 = arith.mulf %243, %255 : vector<8x128xf32>
    %257 = arith.addf %252, %256 : vector<8x128xf32>
    %258 = math.tanh %257 : vector<8x128xf32>
    %cst_70 = arith.constant 1.000000e+00 : f32
    %259 = vector.broadcast %cst_70 : f32 to vector<8x128xf32>
    %260 = arith.subf %259, %251 : vector<8x128xf32>
    %261 = arith.mulf %260, %258 : vector<8x128xf32>
    %262 = arith.mulf %251, %227 : vector<8x128xf32>
    %263 = arith.addf %261, %262 : vector<8x128xf32>
    %264 = arith.index_cast %c6_i32 : i32 to index
    %c0_71 = arith.constant 0 : index
    %c0_72 = arith.constant 0 : index
    %265 = vector.load %arg7[%264, %c0_71, %c0_72] : memref<8x8x128xf32, #tpu.memory_space<vmem>>, vector<1x8x128xf32>
    %266 = vector.shape_cast %265 : vector<1x8x128xf32> to vector<8x128xf32>
    %267 = vector.shape_cast %263 : vector<8x128xf32> to vector<1x8x128xf32>
    tpu.vector_store %arg7[%264, %c0_71, %c0_72], %267 {strides = array<i32>} : memref<8x8x128xf32, #tpu.memory_space<vmem>>, vector<1x8x128xf32>,
    %c7_i32 = arith.constant 7 : i32
    %268 = arith.index_cast %c7_i32 : i32 to index
    %c0_73 = arith.constant 0 : index
    %c0_74 = arith.constant 0 : index
    %269 = vector.load %arg8[%268, %c0_73, %c0_74] : memref<8x8x384xf32, #tpu.memory_space<vmem>>, vector<1x8x384xf32>
    %270 = vector.shape_cast %269 : vector<1x8x384xf32> to vector<8x384xf32>
    %cst_75 = arith.constant dense<0.000000e+00> : vector<8x384xf32>
    %271 = tpu.matmul %263, %13, %cst_75 {dimension_numbers = #tpu.dot_dimension_numbers<[1], [0], [0], [1], [0, 0, 1, 1], [], []>} : vector<8x128xf32>, vector<128x384xf32>, vector<8x384xf32> -> vector<8x384xf32>
    %272 = vector.extract_strided_slice %270 {offsets = [0, 0], sizes = [8, 128], strides = [1, 1]} : vector<8x384xf32> to vector<8x128xf32>
    %273 = vector.extract_strided_slice %271 {offsets = [0, 0], sizes = [8, 128], strides = [1, 1]} : vector<8x384xf32> to vector<8x128xf32>
    %274 = arith.addf %272, %273 : vector<8x128xf32>
    %275 = arith.negf %274 : vector<8x128xf32>
    %276 = math.exp %275 : vector<8x128xf32>
    %cst_76 = arith.constant 1.000000e+00 : f32
    %277 = vector.broadcast %cst_76 : f32 to vector<8x128xf32>
    %278 = arith.addf %277, %276 : vector<8x128xf32>
    %279 = arith.divf %277, %278 : vector<8x128xf32>
    %280 = vector.extract_strided_slice %270 {offsets = [0, 128], sizes = [8, 128], strides = [1, 1]} : vector<8x384xf32> to vector<8x128xf32>
    %281 = vector.extract_strided_slice %271 {offsets = [0, 128], sizes = [8, 128], strides = [1, 1]} : vector<8x384xf32> to vector<8x128xf32>
    %282 = arith.addf %280, %281 : vector<8x128xf32>
    %283 = arith.negf %282 : vector<8x128xf32>
    %284 = math.exp %283 : vector<8x128xf32>
    %cst_77 = arith.constant 1.000000e+00 : f32
    %285 = vector.broadcast %cst_77 : f32 to vector<8x128xf32>
    %286 = arith.addf %285, %284 : vector<8x128xf32>
    %287 = arith.divf %285, %286 : vector<8x128xf32>
    %288 = vector.extract_strided_slice %270 {offsets = [0, 256], sizes = [8, 128], strides = [1, 1]} : vector<8x384xf32> to vector<8x128xf32>
    %289 = vector.extract_strided_slice %271 {offsets = [0, 256], sizes = [8, 128], strides = [1, 1]} : vector<8x384xf32> to vector<8x128xf32>
    %290 = vector.broadcast %14 : vector<1x128xf32> to vector<8x128xf32>
    %291 = arith.addf %289, %290 : vector<8x128xf32>
    %292 = arith.mulf %279, %291 : vector<8x128xf32>
    %293 = arith.addf %288, %292 : vector<8x128xf32>
    %294 = math.tanh %293 : vector<8x128xf32>
    %cst_78 = arith.constant 1.000000e+00 : f32
    %295 = vector.broadcast %cst_78 : f32 to vector<8x128xf32>
    %296 = arith.subf %295, %287 : vector<8x128xf32>
    %297 = arith.mulf %296, %294 : vector<8x128xf32>
    %298 = arith.mulf %287, %263 : vector<8x128xf32>
    %299 = arith.addf %297, %298 : vector<8x128xf32>
    %300 = arith.index_cast %c7_i32 : i32 to index
    %c0_79 = arith.constant 0 : index
    %c0_80 = arith.constant 0 : index
    %301 = vector.load %arg7[%300, %c0_79, %c0_80] : memref<8x8x128xf32, #tpu.memory_space<vmem>>, vector<1x8x128xf32>
    %302 = vector.shape_cast %301 : vector<1x8x128xf32> to vector<8x128xf32>
    %303 = vector.shape_cast %299 : vector<8x128xf32> to vector<1x8x128xf32>
    tpu.vector_store %arg7[%300, %c0_79, %c0_80], %303 {strides = array<i32>} : memref<8x8x128xf32, #tpu.memory_space<vmem>>, vector<1x8x128xf32>,
    %c8_i32 = arith.constant 8 : i32
    %c0_81 = arith.constant 0 : index
    %c0_82 = arith.constant 0 : index
    %304 = vector.load %arg9[%c0_81, %c0_82] : memref<8x128xf32, #tpu.memory_space<vmem>>, vector<8x128xf32>
    tpu.vector_store %arg9[%c0_81, %c0_82], %299 {strides = array<i32>} : memref<8x128xf32, #tpu.memory_space<vmem>>, vector<8x128xf32>,
    return
  }
  func.func @transform_0(%arg0: i32, %arg1: i32) -> (i32, i32, i32) {
    %c0_i32 = arith.constant 0 : i32
    %c0_i32_0 = arith.constant 0 : i32
    return %arg1, %arg0, %c0_i32 : i32, i32, i32
  }
  func.func @transform_1(%arg0: i32, %arg1: i32) -> (i32, i32) {
    %c0_i32 = arith.constant 0 : i32
    %c0_i32_0 = arith.constant 0 : i32
    %c0_i32_1 = arith.constant 0 : i32
    return %c0_i32, %c0_i32_0 : i32, i32
  }
  func.func @transform_2(%arg0: i32, %arg1: i32) -> (i32, i32) {
    %c0_i32 = arith.constant 0 : i32
    %c0_i32_0 = arith.constant 0 : i32
    %c0_i32_1 = arith.constant 0 : i32
    return %c0_i32, %c0_i32_0 : i32, i32
  }
  func.func @transform_3(%arg0: i32, %arg1: i32) -> (i32, i32) {
    %c0_i32 = arith.constant 0 : i32
    %c0_i32_0 = arith.constant 0 : i32
    %c0_i32_1 = arith.constant 0 : i32
    return %c0_i32, %c0_i32_0 : i32, i32
  }
  func.func @transform_4(%arg0: i32, %arg1: i32) -> (i32, i32) {
    %c0_i32 = arith.constant 0 : i32
    %c0_i32_0 = arith.constant 0 : i32
    %c0_i32_1 = arith.constant 0 : i32
    return %c0_i32, %c0_i32_0 : i32, i32
  }
  func.func @transform_5(%arg0: i32, %arg1: i32) -> (i32, i32, i32) {
    %c0_i32 = arith.constant 0 : i32
    %c0_i32_0 = arith.constant 0 : i32
    return %arg1, %arg0, %c0_i32 : i32, i32, i32
  }
}

</mosaic_0001>

<llo_original>
// kernel: tpu_custom_call.1
$region0: #{tpu_custom_call.1}
  #allocation0 [shape = 'u32[]', space=smem, size = 0x4, offset = 0x4, fixed_abs, tag = 'smem constant byte address 0x4 - core index']
  #allocation1 [shape = 'u32[144,128]{1,0:T(1,128)}', space=vmem, size = 0x12000, scoped, tag = 'internal scratch']
  #allocation2 [shape = 'f32[8,8,384]{2,1,0:T(8,128)}', space=vmem, size = 0x18000, scoped, tag = 'scratch operand']
  #allocation3 [shape = 'f32[8,128]{1,0:T(8,128)}', space=vmem, size = 0x1000, scoped, tag = 'scratch operand']
  %s0 = inlined_call_operand.hbm [shape: f32[8,8,128], index: 0, kind: input, shape index: {}]
  %s1 = inlined_call_operand.hbm [shape: f32[128,384], index: 1, kind: input, shape index: {}]
  %s2 = inlined_call_operand.vmem [shape: f32[1,384], index: 2, kind: input, shape index: {}]
  %s3 = inlined_call_operand.hbm [shape: f32[128,384], index: 3, kind: input, shape index: {}]
  %s4 = inlined_call_operand.vmem [shape: f32[1,128], index: 4, kind: input, shape index: {}]
  %s5 = inlined_call_operand.hbm [shape: f32[8,8,128], index: 5, kind: output, shape index: {}]
  %s6 = sld [smem:[#allocation0]]
  $region46: #{tpu_custom_call.1} parent=0
    _
  %s8 = ssub.s32 1, %s6
  %s9 = scalar_select 0, %s8, %s6
  $region1: #{tpu_custom_call.1} parent=0
    #allocation4 [shape = 'u8[32768]{0}', space=vmem, size = 0x8000, scoped, tag = 'input window, operand 0, single buffered']
    #allocation5 [shape = 's32[1]{0}', space=sflag, size = 0x4, scoped, tag = 'scoped memory for tpu_custom_call.1']
    #allocation6 [shape = 's32[1]{0}', space=sflag, size = 0x4, scoped, tag = 'scoped memory for tpu_custom_call.1']
    #allocation7 [shape = 'u8[196608]{0}', space=vmem, size = 0x30000, scoped, tag = 'input window, operand 1, single buffered']
    #allocation8 [shape = 's32[1]{0}', space=sflag, size = 0x4, scoped, tag = 'scoped memory for tpu_custom_call.1']
    #allocation9 [shape = 'u8[196608]{0}', space=vmem, size = 0x30000, scoped, tag = 'input window, operand 3, single buffered']
    #allocation10 [shape = 'u8[32768]{0}', space=vmem, size = 0x8000, scoped, tag = 'output window, operand 0, single buffered']
    %10 = vsyncpa [#allocation5], 0
    %11 = vsyncpa [#allocation8], 0
    %12 = vsyncpa [#allocation6], 0
    // Predicated region
    $region2: #{tpu_custom_call.1} parent=1 // pred_check
      _
    $region3: #{tpu_custom_call.1} parent=1 // pred_check_branch
      %14 = sbr.rel (0) target = $region5
    $region4: #{tpu_custom_call.1} parent=1 // pred_region
      %s16 = ssub.s32 1024, 1024
      %17 = vsyncadd [#allocation5], %s16
      %s18 = sshll.u32 [#allocation4], 4
      %s19 = int_to_ptr.vmem [resolvable:$true] %s18
      %24 = dma.hbm_to_vmem [thread:$0]  %s0, 1024, %s19, [#allocation5], 128, 128, 8
    $region5: #{tpu_custom_call.1} parent=1 // pred_fallthru
      _
    // Predicated region
    $region6: #{tpu_custom_call.1} parent=1 // pred_check
      _
    $region7: #{tpu_custom_call.1} parent=1 // pred_check_branch
      %26 = sbr.rel (0) target = $region9
    $region8: #{tpu_custom_call.1} parent=1 // pred_region
      %s28 = ssub.s32 6144, 6144
      %29 = vsyncadd [#allocation8], %s28
      %s30 = sshll.u32 [#allocation7], 4
      %s31 = int_to_ptr.vmem [resolvable:$true] %s30
      %36 = dma.hbm_to_vmem [thread:$0]  %s1, 6144, %s31, [#allocation8], 384, 384, 24
    $region9: #{tpu_custom_call.1} parent=1 // pred_fallthru
      _
    // Predicated region
    $region10: #{tpu_custom_call.1} parent=1 // pred_check
      _
    $region11: #{tpu_custom_call.1} parent=1 // pred_check_branch
      %38 = sbr.rel (0) target = $region13
    $region12: #{tpu_custom_call.1} parent=1 // pred_region
      _
    $region13: #{tpu_custom_call.1} parent=1 // pred_fallthru
      _
    // Predicated region
    $region14: #{tpu_custom_call.1} parent=1 // pred_check
      _
    $region15: #{tpu_custom_call.1} parent=1 // pred_check_branch
      %40 = sbr.rel (0) target = $region17
    $region16: #{tpu_custom_call.1} parent=1 // pred_region
      %s42 = ssub.s32 6144, 6144
      %43 = vsyncadd [#allocation8], %s42
      %s44 = sshll.u32 [#allocation9], 4
      %s45 = int_to_ptr.vmem [resolvable:$true] %s44
      %50 = dma.hbm_to_vmem [thread:$0]  %s3, 6144, %s45, [#allocation8], 384, 384, 24
    $region17: #{tpu_custom_call.1} parent=1 // pred_fallthru
      _
    // Predicated region
    $region18: #{tpu_custom_call.1} parent=1 // pred_check
      _
    $region19: #{tpu_custom_call.1} parent=1 // pred_check_branch
      %52 = sbr.rel (0) target = $region21
    $region20: #{tpu_custom_call.1} parent=1 // pred_region
      _
    $region21: #{tpu_custom_call.1} parent=1 // pred_fallthru
      _
    // Predicated region
    $region22: #{tpu_custom_call.1} parent=1 // pred_check
      _
    $region23: #{tpu_custom_call.1} parent=1 // pred_check_branch
      %54 = sbr.rel (0) target = $region25
    $region24: #{tpu_custom_call.1} parent=1 // pred_region
      %55 = dma.done [#allocation5], 1024
    $region25: #{tpu_custom_call.1} parent=1 // pred_fallthru
      _
    // Predicated region
    $region26: #{tpu_custom_call.1} parent=1 // pred_check
      _
    $region27: #{tpu_custom_call.1} parent=1 // pred_check_branch
      %57 = sbr.rel (0) target = $region29
    $region28: #{tpu_custom_call.1} parent=1 // pred_region
      %58 = dma.done [#allocation8], 6144
    $region29: #{tpu_custom_call.1} parent=1 // pred_fallthru
      _
    // Predicated region
    $region30: #{tpu_custom_call.1} parent=1 // pred_check
      _
    $region31: #{tpu_custom_call.1} parent=1 // pred_check_branch
      %60 = sbr.rel (0) target = $region33
    $region32: #{tpu_custom_call.1} parent=1 // pred_region
      %61 = dma.done [#allocation8], 6144
    $region33: #{tpu_custom_call.1} parent=1 // pred_fallthru
      _
    %p62 = scmp.eq.s32.totalorder 0, 0
    // Predicated region
    $region34: #{tpu_custom_call.1} parent=1 // pred_check
      %p63 = pneg %p62
    $region35: #{tpu_custom_call.1} parent=1 // pred_check_branch
      %65 = sbr.rel (%p63) target = $region37
    $region36: #{tpu_custom_call.1} parent=1 // pred_region
      %66 = vst [vmem:[#allocation3] sm:$0xff] 0.0
    $region37: #{tpu_custom_call.1} parent=1 // pred_fallthru
      _
    %v67 = vld [vmem:[#allocation4] sm:$0xff]
    %v68 = vld [vmem:[#allocation4 + $0x8] sm:$0xff]
    %v69 = vld [vmem:[#allocation4 + $0x10] sm:$0xff]
    %v70 = vld [vmem:[#allocation4 + $0x18] sm:$0xff]
    %v71 = vld [vmem:[#allocation4 + $0x20] sm:$0xff]
    %v72 = vld [vmem:[#allocation4 + $0x28] sm:$0xff]
    %v73 = vld [vmem:[#allocation4 + $0x30] sm:$0xff]
    %v74 = vld [vmem:[#allocation4 + $0x38] sm:$0xff]
    %v75 = vld [vmem:[#allocation7] sm:$0xff]
    %v76 = vld [vmem:[#allocation7 + $0x8] sm:$0xff]
    %v77 = vld [vmem:[#allocation7 + $0x10] sm:$0xff]
    %v78 = vld [vmem:[#allocation7 + $0x18] sm:$0xff]
    %v79 = vld [vmem:[#allocation7 + $0x20] sm:$0xff]
    %v80 = vld [vmem:[#allocation7 + $0x28] sm:$0xff]
    %v81 = vld [vmem:[#allocation7 + $0x30] sm:$0xff]
    %v82 = vld [vmem:[#allocation7 + $0x38] sm:$0xff]
    %v83 = vld [vmem:[#allocation7 + $0x40] sm:$0xff]
    %v84 = vld [vmem:[#allocation7 + $0x48] sm:$0xff]
    %v85 = vld [vmem:[#allocation7 + $0x50] sm:$0xff]
    %v86 = vld [vmem:[#allocation7 + $0x58] sm:$0xff]
    %v87 = vld [vmem:[#allocation7 + $0x60] sm:$0xff]
    %v88 = vld [vmem:[#allocation7 + $0x68] sm:$0xff]
    %v89 = vld [vmem:[#allocation7 + $0x70] sm:$0xff]
    %v90 = vld [vmem:[#allocation7 + $0x78] sm:$0xff]
    %v91 = vld [vmem:[#allocation7 + $0x80] sm:$0xff]
    %v92 = vld [vmem:[#allocation7 + $0x88] sm:$0xff]
    %v93 = vld [vmem:[#allocation7 + $0x90] sm:$0xff]
    %v94 = vld [vmem:[#allocation7 + $0x98] sm:$0xff]
    %v95 = vld [vmem:[#allocation7 + $0xa0] sm:$0xff]
    %v96 = vld [vmem:[#allocation7 + $0xa8] sm:$0xff]
    %v97 = vld [vmem:[#allocation7 + $0xb0] sm:$0xff]
    %v98 = vld [vmem:[#allocation7 + $0xb8] sm:$0xff]
    %v99 = vld [vmem:[#allocation7 + $0xc0] sm:$0xff]
    %v100 = vld [vmem:[#allocation7 + $0xc8] sm:$0xff]
    %v101 = vld [vmem:[#allocation7 + $0xd0] sm:$0xff]
    %v102 = vld [vmem:[#allocation7 + $0xd8] sm:$0xff]
    %v103 = vld [vmem:[#allocation7 + $0xe0] sm:$0xff]
    %v104 = vld [vmem:[#allocation7 + $0xe8] sm:$0xff]
    %v105 = vld [vmem:[#allocation7 + $0xf0] sm:$0xff]
    %v106 = vld [vmem:[#allocation7 + $0xf8] sm:$0xff]
    %v107 = vld [vmem:[#allocation7 + $0x100] sm:$0xff]
    %v108 = vld [vmem:[#allocation7 + $0x108] sm:$0xff]
    %v109 = vld [vmem:[#allocation7 + $0x110] sm:$0xff]
    %v110 = vld [vmem:[#allocation7 + $0x118] sm:$0xff]
    %v111 = vld [vmem:[#allocation7 + $0x120] sm:$0xff]
    %v112 = vld [vmem:[#allocation7 + $0x128] sm:$0xff]
    %v113 = vld [vmem:[#allocation7 + $0x130] sm:$0xff]
    %v114 = vld [vmem:[#allocation7 + $0x138] sm:$0xff]
    %v115 = vld [vmem:[#allocation7 + $0x140] sm:$0xff]
    %v116 = vld [vmem:[#allocation7 + $0x148] sm:$0xff]
    %v117 = vld [vmem:[#allocation7 + $0x150] sm:$0xff]
    %v118 = vld [vmem:[#allocation7 + $0x158] sm:$0xff]
    %v119 = vld [vmem:[#allocation7 + $0x160] sm:$0xff]
    %v120 = vld [vmem:[#allocation7 + $0x168] sm:$0xff]
    %v121 = vld [vmem:[#allocation7 + $0x170] sm:$0xff]
    %v122 = vld [vmem:[#allocation7 + $0x178] sm:$0xff]
    %123 = vmatprep.subr.mxu0 %v76
    %124 = vmatpush1.msra.mxu0 %v75
    %125 = vmatprep.subr.mxu0 %v79
    %126 = vmatpush1.msra.mxu0 %v78
    %127 = vmatprep.subr.mxu0 %v82
    %128 = vmatpush1.msra.mxu0 %v81
    %129 = vmatprep.subr.mxu0 %v85
    %130 = vmatpush1.msra.mxu0 %v84
    %131 = vmatprep.subr.mxu0 %v88
    %132 = vmatpush1.msra.mxu0 %v87
    %133 = vmatprep.subr.mxu0 %v91
    %134 = vmatpush1.msra.mxu0 %v90
    %135 = vmatprep.subr.mxu0 %v94
    %136 = vmatpush1.msra.mxu0 %v93
    %137 = vmatprep.subr.mxu0 %v97
    %138 = vmatpush1.msra.mxu0 %v96
    %139 = vmatprep.subr.mxu0 %v100
    %140 = vmatpush1.msra.mxu0 %v99
    %141 = vmatprep.subr.mxu0 %v103
    %142 = vmatpush1.msra.mxu0 %v102
    %143 = vmatprep.subr.mxu0 %v106
    %144 = vmatpush1.msra.mxu0 %v105
    %145 = vmatprep.subr.mxu0 %v109
    %146 = vmatpush1.msra.mxu0 %v108
    %147 = vmatprep.subr.mxu0 %v112
    %148 = vmatpush1.msra.mxu0 %v111
    %149 = vmatprep.subr.mxu0 %v115
    %150 = vmatpush1.msra.mxu0 %v114
    %151 = vmatprep.subr.mxu0 %v118
    %152 = vmatpush1.msra.mxu0 %v117
    %153 = vmatprep.subr.mxu0 %v121
    %154 = vmatpush1.msra.mxu0 %v120
    %155 = vmatprep.subr.mxu0 0.0
    %156 = vmatpush1.msra.mxu0 0.0
    %157 = vmatprep.subr.mxu0 0.0
    %158 = vmatpush1.msra.mxu0 0.0
    %159 = vmatprep.subr.mxu0 0.0
    %160 = vmatpush1.msra.mxu0 0.0
    %161 = vmatprep.subr.mxu0 0.0
    %162 = vmatpush1.msra.mxu0 0.0
    %163 = vmatprep.subr.mxu0 0.0
    %164 = vmatpush1.msra.mxu0 0.0
    %165 = vmatprep.subr.mxu0 0.0
    %166 = vmatpush1.msra.mxu0 0.0
    %167 = vmatprep.subr.mxu0 0.0
    %168 = vmatpush1.msra.mxu0 0.0
    %169 = vmatprep.subr.mxu0 0.0
    %170 = vmatpush1.msra.mxu0 0.0
    %171 = vmatprep.subr.mxu0 0.0
    %172 = vmatpush1.msra.mxu0 0.0
    %173 = vmatprep.subr.mxu0 0.0
    %174 = vmatpush1.msra.mxu0 0.0
    %175 = vmatprep.subr.mxu0 0.0
    %176 = vmatpush1.msra.mxu0 0.0
    %177 = vmatprep.subr.mxu0 0.0
    %178 = vmatpush1.msra.mxu0 0.0
    %179 = vmatprep.subr.mxu0 0.0
    %180 = vmatpush1.msra.mxu0 0.0
    %181 = vmatprep.subr.mxu0 0.0
    %182 = vmatpush1.msra.mxu0 0.0
    %183 = vmatprep.subr.mxu0 0.0
    %184 = vmatpush1.msra.mxu0 0.0
    %185 = vmatprep.subr.mxu0 0.0
    %186 = vmatpush1.msra.mxu0 0.0
    %187 = vmatprep.mubr.f32.mxu0 0.0
    %188 = vmatmul.mubr.f32.gmra.mrb[0].mxu0 %v67
    %v189 = vpop.f32.mrb[0].mxu0
    %v190 = vadd.f32 0.0, %v189
    %v191 = vpop.f32.mrb[0].mxu0
    %v192 = vadd.f32 0.0, %v191
    %193 = vmatprep.mubr.f32.mxu0 0.0
    %194 = vmatmul.mubr.f32.gmra.mrb[0].mxu0 %v68
    %v195 = vpop.f32.mrb[0].mxu0
    %v196 = vadd.f32 0.0, %v195
    %v197 = vpop.f32.mrb[0].mxu0
    %v198 = vadd.f32 0.0, %v197
    %199 = vmatprep.mubr.f32.mxu0 0.0
    %200 = vmatmul.mubr.f32.gmra.mrb[0].mxu0 %v69
    %v201 = vpop.f32.mrb[0].mxu0
    %v202 = vadd.f32 0.0, %v201
    %v203 = vpop.f32.mrb[0].mxu0
    %v204 = vadd.f32 0.0, %v203
    %205 = vmatprep.mubr.f32.mxu0 0.0
    %206 = vmatmul.mubr.f32.gmra.mrb[0].mxu0 %v70
    %v207 = vpop.f32.mrb[0].mxu0
    %v208 = vadd.f32 0.0, %v207
    %v209 = vpop.f32.mrb[0].mxu0
    %v210 = vadd.f32 0.0, %v209
    %211 = vmatprep.mubr.f32.mxu0 0.0
    %212 = vmatmul.mubr.f32.gmra.mrb[0].mxu0 %v71
    %v213 = vpop.f32.mrb[0].mxu0
    %v214 = vadd.f32 0.0, %v213
    %v215 = vpop.f32.mrb[0].mxu0
    %v216 = vadd.f32 0.0, %v215
    %217 = vmatprep.mubr.f32.mxu0 0.0
    %218 = vmatmul.mubr.f32.gmra.mrb[0].mxu0 %v72
    %v219 = vpop.f32.mrb[0].mxu0
    %v220 = vadd.f32 0.0, %v219
    %v221 = vpop.f32.mrb[0].mxu0
    %v222 = vadd.f32 0.0, %v221
    %223 = vmatprep.mubr.f32.mxu0 0.0
    %224 = vmatmul.mubr.f32.gmra.mrb[0].mxu0 %v73
    %v225 = vpop.f32.mrb[0].mxu0
    %v226 = vadd.f32 0.0, %v225
    %v227 = vpop.f32.mrb[0].mxu0
    %v228 = vadd.f32 0.0, %v227
    %229 = vmatprep.mubr.f32.mxu0 0.0
    %230 = vmatmul.mubr.f32.gmra.mrb[0].mxu0 %v74
    %v231 = vpop.f32.mrb[0].mxu0
    %v232 = vadd.f32 0.0, %v231
    %v233 = vpop.f32.mrb[0].mxu0
    %v234 = vadd.f32 0.0, %v233
    %235 = vdwg.mxu0
    %236 = vmatprep.subr.mxu0 0.0
    %237 = vmatpush1.msra.mxu0 %v77
    %238 = vmatprep.subr.mxu0 0.0
    %239 = vmatpush1.msra.mxu0 %v80
    %240 = vmatprep.subr.mxu0 0.0
    %241 = vmatpush1.msra.mxu0 %v83
    %242 = vmatprep.subr.mxu0 0.0
    %243 = vmatpush1.msra.mxu0 %v86
    %244 = vmatprep.subr.mxu0 0.0
    %245 = vmatpush1.msra.mxu0 %v89
    %246 = vmatprep.subr.mxu0 0.0
    %247 = vmatpush1.msra.mxu0 %v92
    %248 = vmatprep.subr.mxu0 0.0
    %249 = vmatpush1.msra.mxu0 %v95
    %250 = vmatprep.subr.mxu0 0.0
    %251 = vmatpush1.msra.mxu0 %v98
    %252 = vmatprep.subr.mxu0 0.0
    %253 = vmatpush1.msra.mxu0 %v101
    %254 = vmatprep.subr.mxu0 0.0
    %255 = vmatpush1.msra.mxu0 %v104
    %256 = vmatprep.subr.mxu0 0.0
    %257 = vmatpush1.msra.mxu0 %v107
    %258 = vmatprep.subr.mxu0 0.0
    %259 = vmatpush1.msra.mxu0 %v110
    %260 = vmatprep.subr.mxu0 0.0
    %261 = vmatpush1.msra.mxu0 %v113
    %262 = vmatprep.subr.mxu0 0.0
    %263 = vmatpush1.msra.mxu0 %v116
    %264 = vmatprep.subr.mxu0 0.0
    %265 = vmatpush1.msra.mxu0 %v119
    %266 = vmatprep.subr.mxu0 0.0
    %267 = vmatpush1.msra.mxu0 %v122
    %268 = vmatprep.subr.mxu0 0.0
    %269 = vmatpush1.msra.mxu0 0.0
    %270 = vmatprep.subr.mxu0 0.0
    %271 = vmatpush1.msra.mxu0 0.0
    %272 = vmatprep.subr.mxu0 0.0
    %273 = vmatpush1.msra.mxu0 0.0
    %274 = vmatprep.subr.mxu0 0.0
    %275 = vmatpush1.msra.mxu0 0.0
    %276 = vmatprep.subr.mxu0 0.0
    %277 = vmatpush1.msra.mxu0 0.0
    %278 = vmatprep.subr.mxu0 0.0
    %279 = vmatpush1.msra.mxu0 0.0
    %280 = vmatprep.subr.mxu0 0.0
    %281 = vmatpush1.msra.mxu0 0.0
    %282 = vmatprep.subr.mxu0 0.0
    %283 = vmatpush1.msra.mxu0 0.0
    %284 = vmatprep.subr.mxu0 0.0
    %285 = vmatpush1.msra.mxu0 0.0
    %286 = vmatprep.subr.mxu0 0.0
    %287 = vmatpush1.msra.mxu0 0.0
    %288 = vmatprep.subr.mxu0 0.0
    %289 = vmatpush1.msra.mxu0 0.0
    %290 = vmatprep.subr.mxu0 0.0
    %291 = vmatpush1.msra.mxu0 0.0
    %292 = vmatprep.subr.mxu0 0.0
    %293 = vmatpush1.msra.mxu0 0.0
    %294 = vmatprep.subr.mxu0 0.0
    %295 = vmatpush1.msra.mxu0 0.0
    %296 = vmatprep.subr.mxu0 0.0
    %297 = vmatpush1.msra.mxu0 0.0
    %298 = vmatprep.subr.mxu0 0.0
    %299 = vmatpush1.msra.mxu0 0.0
    %300 = vmatprep.mubr.f32.mxu0 0.0
    %301 = vmatmul.mubr.f32.gmra.mrb[0].mxu0 %v67
    %v302 = vpop.f32.mrb[0].mxu0
    %v303 = vadd.f32 0.0, %v302
    %v304 = vpop.f32.mrb[0].mxu0
    %305 = vmatprep.mubr.f32.mxu0 0.0
    %306 = vmatmul.mubr.f32.gmra.mrb[0].mxu0 %v68
    %v307 = vpop.f32.mrb[0].mxu0
    %v308 = vadd.f32 0.0, %v307
    %v309 = vpop.f32.mrb[0].mxu0
    %310 = vmatprep.mubr.f32.mxu0 0.0
    %311 = vmatmul.mubr.f32.gmra.mrb[0].mxu0 %v69
    %v312 = vpop.f32.mrb[0].mxu0
    %v313 = vadd.f32 0.0, %v312
    %v314 = vpop.f32.mrb[0].mxu0
    %315 = vmatprep.mubr.f32.mxu0 0.0
    %316 = vmatmul.mubr.f32.gmra.mrb[0].mxu0 %v70
    %v317 = vpop.f32.mrb[0].mxu0
    %v318 = vadd.f32 0.0, %v317
    %v319 = vpop.f32.mrb[0].mxu0
    %320 = vmatprep.mubr.f32.mxu0 0.0
    %321 = vmatmul.mubr.f32.gmra.mrb[0].mxu0 %v71
    %v322 = vpop.f32.mrb[0].mxu0
    %v323 = vadd.f32 0.0, %v322
    %v324 = vpop.f32.mrb[0].mxu0
    %325 = vmatprep.mubr.f32.mxu0 0.0
    %326 = vmatmul.mubr.f32.gmra.mrb[0].mxu0 %v72
    %v327 = vpop.f32.mrb[0].mxu0
    %v328 = vadd.f32 0.0, %v327
    %v329 = vpop.f32.mrb[0].mxu0
    %330 = vmatprep.mubr.f32.mxu0 0.0
    %331 = vmatmul.mubr.f32.gmra.mrb[0].mxu0 %v73
    %v332 = vpop.f32.mrb[0].mxu0
    %v333 = vadd.f32 0.0, %v332
    %v334 = vpop.f32.mrb[0].mxu0
    %335 = vmatprep.mubr.f32.mxu0 0.0
    %336 = vmatmul.mubr.f32.gmra.mrb[0].mxu0 %v74
    %v337 = vpop.f32.mrb[0].mxu0
    %v338 = vadd.f32 0.0, %v337
    %v339 = vpop.f32.mrb[0].mxu0
    %340 = vdwg.mxu0
    %v341 = vld [vmem:[%s2] sm:$0x7]
    %v343 = vlaneseq
    %v344 = vshrl.u32 %v343, 7
    %v345 = vsub.s32 0, %v344
    %v346 = vrot.slane %v341, %v345
    %v347 = vlaneseq
    %v348 = vshrl.u32 %v347, 7
    %v349 = vsub.s32 1, %v348
    %v350 = vrot.slane %v341, %v349
    %v351 = vlaneseq
    %v352 = vshrl.u32 %v351, 7
    %v353 = vsub.s32 2, %v352
    %v354 = vrot.slane %v341, %v353
    %v358 = vadd.f32 %v190, %v346
    %v359 = vadd.f32 %v192, %v350
    %v360 = vadd.f32 %v303, %v354
    %v361 = vadd.f32 %v196, %v346
    %v362 = vadd.f32 %v198, %v350
    %v363 = vadd.f32 %v308, %v354
    %v364 = vadd.f32 %v202, %v346
    %v365 = vadd.f32 %v204, %v350
    %v366 = vadd.f32 %v313, %v354
    %v367 = vadd.f32 %v208, %v346
    %v368 = vadd.f32 %v210, %v350
    %v369 = vadd.f32 %v318, %v354
    %v370 = vadd.f32 %v214, %v346
    %v371 = vadd.f32 %v216, %v350
    %v372 = vadd.f32 %v323, %v354
    %v373 = vadd.f32 %v220, %v346
    %v374 = vadd.f32 %v222, %v350
    %v375 = vadd.f32 %v328, %v354
    %v376 = vadd.f32 %v226, %v346
    %v377 = vadd.f32 %v228, %v350
    %v378 = vadd.f32 %v333, %v354
    %v379 = vadd.f32 %v232, %v346
    %v380 = vadd.f32 %v234, %v350
    %v381 = vadd.f32 %v338, %v354
    %382 = vst [vmem:[#allocation2] sm:$0xff] %v358
    %383 = vst [vmem:[#allocation2 + $0x8] sm:$0xff] %v359
    %384 = vst [vmem:[#allocation2 + $0x10] sm:$0xff] %v360
    %385 = vst [vmem:[#allocation2 + $0x18] sm:$0xff] %v361
    %386 = vst [vmem:[#allocation2 + $0x20] sm:$0xff] %v362
    %387 = vst [vmem:[#allocation2 + $0x28] sm:$0xff] %v363
    %388 = vst [vmem:[#allocation2 + $0x30] sm:$0xff] %v364
    %389 = vst [vmem:[#allocation2 + $0x38] sm:$0xff] %v365
    %390 = vst [vmem:[#allocation2 + $0x40] sm:$0xff] %v366
    %391 = vst [vmem:[#allocation2 + $0x48] sm:$0xff] %v367
    %392 = vst [vmem:[#allocation2 + $0x50] sm:$0xff] %v368
    %393 = vst [vmem:[#allocation2 + $0x58] sm:$0xff] %v369
    %394 = vst [vmem:[#allocation2 + $0x60] sm:$0xff] %v370
    %395 = vst [vmem:[#allocation2 + $0x68] sm:$0xff] %v371
    %396 = vst [vmem:[#allocation2 + $0x70] sm:$0xff] %v372
    %397 = vst [vmem:[#allocation2 + $0x78] sm:$0xff] %v373
    %398 = vst [vmem:[#allocation2 + $0x80] sm:$0xff] %v374
    %399 = vst [vmem:[#allocation2 + $0x88] sm:$0xff] %v375
    %400 = vst [vmem:[#allocation2 + $0x90] sm:$0xff] %v376
    %401 = vst [vmem:[#allocation2 + $0x98] sm:$0xff] %v377
    %402 = vst [vmem:[#allocation2 + $0xa0] sm:$0xff] %v378
    %403 = vst [vmem:[#allocation2 + $0xa8] sm:$0xff] %v379
    %404 = vst [vmem:[#allocation2 + $0xb0] sm:$0xff] %v380
    %405 = vst [vmem:[#allocation2 + $0xb8] sm:$0xff] %v381
    %v406 = vld [vmem:[#allocation9] sm:$0xff]
    %v407 = vld [vmem:[#allocation9 + $0x8] sm:$0xff]
    %v408 = vld [vmem:[#allocation9 + $0x10] sm:$0xff]
    %v409 = vld [vmem:[#allocation9 + $0x18] sm:$0xff]
    %v410 = vld [vmem:[#allocation9 + $0x20] sm:$0xff]
    %v411 = vld [vmem:[#allocation9 + $0x28] sm:$0xff]
    %v412 = vld [vmem:[#allocation9 + $0x30] sm:$0xff]
    %v413 = vld [vmem:[#allocation9 + $0x38] sm:$0xff]
    %v414 = vld [vmem:[#allocation9 + $0x40] sm:$0xff]
    %v415 = vld [vmem:[#allocation9 + $0x48] sm:$0xff]
    %v416 = vld [vmem:[#allocation9 + $0x50] sm:$0xff]
    %v417 = vld [vmem:[#allocation9 + $0x58] sm:$0xff]
    %v418 = vld [vmem:[#allocation9 + $0x60] sm:$0xff]
    %v419 = vld [vmem:[#allocation9 + $0x68] sm:$0xff]
    %v420 = vld [vmem:[#allocation9 + $0x70] sm:$0xff]
    %v421 = vld [vmem:[#allocation9 + $0x78] sm:$0xff]
    %v422 = vld [vmem:[#allocation9 + $0x80] sm:$0xff]
    %v423 = vld [vmem:[#allocation9 + $0x88] sm:$0xff]
    %v424 = vld [vmem:[#allocation9 + $0x90] sm:$0xff]
    %v425 = vld [vmem:[#allocation9 + $0x98] sm:$0xff]
    %v426 = vld [vmem:[#allocation9 + $0xa0] sm:$0xff]
    %v427 = vld [vmem:[#allocation9 + $0xa8] sm:$0xff]
    %v428 = vld [vmem:[#allocation9 + $0xb0] sm:$0xff]
    %v429 = vld [vmem:[#allocation9 + $0xb8] sm:$0xff]
    %v430 = vld [vmem:[#allocation9 + $0xc0] sm:$0xff]
    %v431 = vld [vmem:[#allocation9 + $0xc8] sm:$0xff]
    %v432 = vld [vmem:[#allocation9 + $0xd0] sm:$0xff]
    %v433 = vld [vmem:[#allocation9 + $0xd8] sm:$0xff]
    %v434 = vld [vmem:[#allocation9 + $0xe0] sm:$0xff]
    %v435 = vld [vmem:[#allocation9 + $0xe8] sm:$0xff]
    %v436 = vld [vmem:[#allocation9 + $0xf0] sm:$0xff]
    %v437 = vld [vmem:[#allocation9 + $0xf8] sm:$0xff]
    %v438 = vld [vmem:[#allocation9 + $0x100] sm:$0xff]
    %v439 = vld [vmem:[#allocation9 + $0x108] sm:$0xff]
    %v440 = vld [vmem:[#allocation9 + $0x110] sm:$0xff]
    %v441 = vld [vmem:[#allocation9 + $0x118] sm:$0xff]
    %v442 = vld [vmem:[#allocation9 + $0x120] sm:$0xff]
    %v443 = vld [vmem:[#allocation9 + $0x128] sm:$0xff]
    %v444 = vld [vmem:[#allocation9 + $0x130] sm:$0xff]
    %v445 = vld [vmem:[#allocation9 + $0x138] sm:$0xff]
    %v446 = vld [vmem:[#allocation9 + $0x140] sm:$0xff]
    %v447 = vld [vmem:[#allocation9 + $0x148] sm:$0xff]
    %v448 = vld [vmem:[#allocation9 + $0x150] sm:$0xff]
    %v449 = vld [vmem:[#allocation9 + $0x158] sm:$0xff]
    %v450 = vld [vmem:[#allocation9 + $0x160] sm:$0xff]
    %v451 = vld [vmem:[#allocation9 + $0x168] sm:$0xff]
    %v452 = vld [vmem:[#allocation9 + $0x170] sm:$0xff]
    %v453 = vld [vmem:[#allocation9 + $0x178] sm:$0xff]
    %v454 = vld [vmem:[%s4] sm:$0x1]
    %v455 = vld [vmem:[#allocation3] sm:$0xff]
    %v456 = vld [vmem:[#allocation2] sm:$0xff]
    %v457 = vld [vmem:[#allocation2 + $0x8] sm:$0xff]
    %v458 = vld [vmem:[#allocation2 + $0x10] sm:$0xff]
    %459 = vmatprep.subr.mxu0 %v407
    %460 = vmatpush1.msra.mxu0 %v406
    %461 = vmatprep.subr.mxu0 %v410
    %462 = vmatpush1.msra.mxu0 %v409
    %463 = vmatprep.subr.mxu0 %v413
    %464 = vmatpush1.msra.mxu0 %v412
    %465 = vmatprep.subr.mxu0 %v416
    %466 = vmatpush1.msra.mxu0 %v415
    %467 = vmatprep.subr.mxu0 %v419
    %468 = vmatpush1.msra.mxu0 %v418
    %469 = vmatprep.subr.mxu0 %v422
    %470 = vmatpush1.msra.mxu0 %v421
    %471 = vmatprep.subr.mxu0 %v425
    %472 = vmatpush1.msra.mxu0 %v424
    %473 = vmatprep.subr.mxu0 %v428
    %474 = vmatpush1.msra.mxu0 %v427
    %475 = vmatprep.subr.mxu0 %v431
    %476 = vmatpush1.msra.mxu0 %v430
    %477 = vmatprep.subr.mxu0 %v434
    %478 = vmatpush1.msra.mxu0 %v433
    %479 = vmatprep.subr.mxu0 %v437
    %480 = vmatpush1.msra.mxu0 %v436
    %481 = vmatprep.subr.mxu0 %v440
    %482 = vmatpush1.msra.mxu0 %v439
    %483 = vmatprep.subr.mxu0 %v443
    %484 = vmatpush1.msra.mxu0 %v442
    %485 = vmatprep.subr.mxu0 %v446
    %486 = vmatpush1.msra.mxu0 %v445
    %487 = vmatprep.subr.mxu0 %v449
    %488 = vmatpush1.msra.mxu0 %v448
    %489 = vmatprep.subr.mxu0 %v452
    %490 = vmatpush1.msra.mxu0 %v451
    %491 = vmatprep.subr.mxu0 0.0
    %492 = vmatpush1.msra.mxu0 0.0
    %493 = vmatprep.subr.mxu0 0.0
    %494 = vmatpush1.msra.mxu0 0.0
    %495 = vmatprep.subr.mxu0 0.0
    %496 = vmatpush1.msra.mxu0 0.0
    %497 = vmatprep.subr.mxu0 0.0
    %498 = vmatpush1.msra.mxu0 0.0
    %499 = vmatprep.subr.mxu0 0.0
    %500 = vmatpush1.msra.mxu0 0.0
    %501 = vmatprep.subr.mxu0 0.0
    %502 = vmatpush1.msra.mxu0 0.0
    %503 = vmatprep.subr.mxu0 0.0
    %504 = vmatpush1.msra.mxu0 0.0
    %505 = vmatprep.subr.mxu0 0.0
    %506 = vmatpush1.msra.mxu0 0.0
    %507 = vmatprep.subr.mxu0 0.0
    %508 = vmatpush1.msra.mxu0 0.0
    %509 = vmatprep.subr.mxu0 0.0
    %510 = vmatpush1.msra.mxu0 0.0
    %511 = vmatprep.subr.mxu0 0.0
    %512 = vmatpush1.msra.mxu0 0.0
    %513 = vmatprep.subr.mxu0 0.0
    %514 = vmatpush1.msra.mxu0 0.0
    %515 = vmatprep.subr.mxu0 0.0
    %516 = vmatpush1.msra.mxu0 0.0
    %517 = vmatprep.subr.mxu0 0.0
    %518 = vmatpush1.msra.mxu0 0.0
    %519 = vmatprep.subr.mxu0 0.0
    %520 = vmatpush1.msra.mxu0 0.0
    %521 = vmatprep.subr.mxu0 0.0
    %522 = vmatpush1.msra.mxu0 0.0
    %523 = vmatprep.mubr.f32.mxu0 0.0
    %524 = vmatmul.mubr.f32.gmra.mrb[0].mxu0 %v455
    %v525 = vpop.f32.mrb[0].mxu0
    %v526 = vadd.f32 0.0, %v525
    %v527 = vpop.f32.mrb[0].mxu0
    %v528 = vadd.f32 0.0, %v527
    %529 = vdwg.mxu0
    %530 = vmatprep.subr.mxu0 0.0
    %531 = vmatpush1.msra.mxu0 %v408
    %532 = vmatprep.subr.mxu0 0.0
    %533 = vmatpush1.msra.mxu0 %v411
    %534 = vmatprep.subr.mxu0 0.0
    %535 = vmatpush1.msra.mxu0 %v414
    %536 = vmatprep.subr.mxu0 0.0
    %537 = vmatpush1.msra.mxu0 %v417
    %538 = vmatprep.subr.mxu0 0.0
    %539 = vmatpush1.msra.mxu0 %v420
    %540 = vmatprep.subr.mxu0 0.0
    %541 = vmatpush1.msra.mxu0 %v423
    %542 = vmatprep.subr.mxu0 0.0
    %543 = vmatpush1.msra.mxu0 %v426
    %544 = vmatprep.subr.mxu0 0.0
    %545 = vmatpush1.msra.mxu0 %v429
    %546 = vmatprep.subr.mxu0 0.0
    %547 = vmatpush1.msra.mxu0 %v432
    %548 = vmatprep.subr.mxu0 0.0
    %549 = vmatpush1.msra.mxu0 %v435
    %550 = vmatprep.subr.mxu0 0.0
    %551 = vmatpush1.msra.mxu0 %v438
    %552 = vmatprep.subr.mxu0 0.0
    %553 = vmatpush1.msra.mxu0 %v441
    %554 = vmatprep.subr.mxu0 0.0
    %555 = vmatpush1.msra.mxu0 %v444
    %556 = vmatprep.subr.mxu0 0.0
    %557 = vmatpush1.msra.mxu0 %v447
    %558 = vmatprep.subr.mxu0 0.0
    %559 = vmatpush1.msra.mxu0 %v450
    %560 = vmatprep.subr.mxu0 0.0
    %561 = vmatpush1.msra.mxu0 %v453
    %562 = vmatprep.subr.mxu0 0.0
    %563 = vmatpush1.msra.mxu0 0.0
    %564 = vmatprep.subr.mxu0 0.0
    %565 = vmatpush1.msra.mxu0 0.0
    %566 = vmatprep.subr.mxu0 0.0
    %567 = vmatpush1.msra.mxu0 0.0
    %568 = vmatprep.subr.mxu0 0.0
    %569 = vmatpush1.msra.mxu0 0.0
    %570 = vmatprep.subr.mxu0 0.0
    %571 = vmatpush1.msra.mxu0 0.0
    %572 = vmatprep.subr.mxu0 0.0
    %573 = vmatpush1.msra.mxu0 0.0
    %574 = vmatprep.subr.mxu0 0.0
    %575 = vmatpush1.msra.mxu0 0.0
    %576 = vmatprep.subr.mxu0 0.0
    %577 = vmatpush1.msra.mxu0 0.0
    %578 = vmatprep.subr.mxu0 0.0
    %579 = vmatpush1.msra.mxu0 0.0
    %580 = vmatprep.subr.mxu0 0.0
    %581 = vmatpush1.msra.mxu0 0.0
    %582 = vmatprep.subr.mxu0 0.0
    %583 = vmatpush1.msra.mxu0 0.0
    %584 = vmatprep.subr.mxu0 0.0
    %585 = vmatpush1.msra.mxu0 0.0
    %586 = vmatprep.subr.mxu0 0.0
    %587 = vmatpush1.msra.mxu0 0.0
    %588 = vmatprep.subr.mxu0 0.0
    %589 = vmatpush1.msra.mxu0 0.0
    %590 = vmatprep.subr.mxu0 0.0
    %591 = vmatpush1.msra.mxu0 0.0
    %592 = vmatprep.subr.mxu0 0.0
    %593 = vmatpush1.msra.mxu0 0.0
    %594 = vmatprep.mubr.f32.mxu0 0.0
    %595 = vmatmul.mubr.f32.gmra.mrb[0].mxu0 %v455
    %v596 = vpop.f32.mrb[0].mxu0
    %v597 = vadd.f32 0.0, %v596
    %v598 = vpop.f32.mrb[0].mxu0
    %599 = vdwg.mxu0
    %v600 = vadd.f32 %v456, %v526
    %v601 = vxor.u32 %v600, 2147483648
    %v602 = vmul.f32 %v601, 1.442695
    %v603 = vpow.pop %v602
    %v604 = vadd.f32 %v603, 1.0
    %v605 = vrcp.pop %v604
    %v606 = vmul.f32 1.0, %v605
    %v607 = vadd.f32 %v457, %v528
    %v608 = vxor.u32 %v607, 2147483648
    %v609 = vmul.f32 %v608, 1.442695
    %v610 = vpow.pop %v609
    %v611 = vadd.f32 %v610, 1.0
    %v612 = vrcp.pop %v611
    %v613 = vmul.f32 1.0, %v612
    %v615 = vlaneseq
    %v616 = vshrl.u32 %v615, 7
    %v617 = vsub.s32 0, %v616
    %v618 = vrot.slane %v454, %v617
    %v620 = vadd.f32 %v597, %v618
    %v621 = vmul.f32 %v606, %v620
    %v622 = vadd.f32 %v458, %v621
    %v623 = vtanh.pop %v622
    %v624 = vsub.f32 1.0, %v613
    %v625 = vmul.f32 %v624, %v623
    %v626 = vmul.f32 %v613, %v455
    %v627 = vadd.f32 %v625, %v626
    %628 = vst [vmem:[#allocation10] sm:$0xff] %v627
    %s629 = scalar_lea.vmem [#allocation2], 24
    %v630 = vld [vmem:[%s629] sm:$0xff]
    %v631 = vld [vmem:[%s629 + $0x8] sm:$0xff]
    %v632 = vld [vmem:[%s629 + $0x10] sm:$0xff]
    %633 = vmatprep.subr.mxu0 %v407
    %634 = vmatpush1.msra.mxu0 %v406
    %635 = vmatprep.subr.mxu0 %v410
    %636 = vmatpush1.msra.mxu0 %v409
    %637 = vmatprep.subr.mxu0 %v413
    %638 = vmatpush1.msra.mxu0 %v412
    %639 = vmatprep.subr.mxu0 %v416
    %640 = vmatpush1.msra.mxu0 %v415
    %641 = vmatprep.subr.mxu0 %v419
    %642 = vmatpush1.msra.mxu0 %v418
    %643 = vmatprep.subr.mxu0 %v422
    %644 = vmatpush1.msra.mxu0 %v421
    %645 = vmatprep.subr.mxu0 %v425
    %646 = vmatpush1.msra.mxu0 %v424
    %647 = vmatprep.subr.mxu0 %v428
    %648 = vmatpush1.msra.mxu0 %v427
    %649 = vmatprep.subr.mxu0 %v431
    %650 = vmatpush1.msra.mxu0 %v430
    %651 = vmatprep.subr.mxu0 %v434
    %652 = vmatpush1.msra.mxu0 %v433
    %653 = vmatprep.subr.mxu0 %v437
    %654 = vmatpush1.msra.mxu0 %v436
    %655 = vmatprep.subr.mxu0 %v440
    %656 = vmatpush1.msra.mxu0 %v439
    %657 = vmatprep.subr.mxu0 %v443
    %658 = vmatpush1.msra.mxu0 %v442
    %659 = vmatprep.subr.mxu0 %v446
    %660 = vmatpush1.msra.mxu0 %v445
    %661 = vmatprep.subr.mxu0 %v449
    %662 = vmatpush1.msra.mxu0 %v448
    %663 = vmatprep.subr.mxu0 %v452
    %664 = vmatpush1.msra.mxu0 %v451
    %665 = vmatprep.subr.mxu0 0.0
    %666 = vmatpush1.msra.mxu0 0.0
    %667 = vmatprep.subr.mxu0 0.0
    %668 = vmatpush1.msra.mxu0 0.0
    %669 = vmatprep.subr.mxu0 0.0
    %670 = vmatpush1.msra.mxu0 0.0
    %671 = vmatprep.subr.mxu0 0.0
    %672 = vmatpush1.msra.mxu0 0.0
    %673 = vmatprep.subr.mxu0 0.0
    %674 = vmatpush1.msra.mxu0 0.0
    %675 = vmatprep.subr.mxu0 0.0
    %676 = vmatpush1.msra.mxu0 0.0
    %677 = vmatprep.subr.mxu0 0.0
    %678 = vmatpush1.msra.mxu0 0.0
    %679 = vmatprep.subr.mxu0 0.0
    %680 = vmatpush1.msra.mxu0 0.0
    %681 = vmatprep.subr.mxu0 0.0
    %682 = vmatpush1.msra.mxu0 0.0
    %683 = vmatprep.subr.mxu0 0.0
    %684 = vmatpush1.msra.mxu0 0.0
    %685 = vmatprep.subr.mxu0 0.0
    %686 = vmatpush1.msra.mxu0 0.0
    %687 = vmatprep.subr.mxu0 0.0
    %688 = vmatpush1.msra.mxu0 0.0
    %689 = vmatprep.subr.mxu0 0.0
    %690 = vmatpush1.msra.mxu0 0.0
    %691 = vmatprep.subr.mxu0 0.0
    %692 = vmatpush1.msra.mxu0 0.0
    %693 = vmatprep.subr.mxu0 0.0
    %694 = vmatpush1.msra.mxu0 0.0
    %695 = vmatprep.subr.mxu0 0.0
    %696 = vmatpush1.msra.mxu0 0.0
    %697 = vmatprep.mubr.f32.mxu0 0.0
    %698 = vmatmul.mubr.f32.gmra.mrb[0].mxu0 %v627
    %v699 = vpop.f32.mrb[0].mxu0
    %v700 = vadd.f32 0.0, %v699
    %v701 = vpop.f32.mrb[0].mxu0
    %v702 = vadd.f32 0.0, %v701
    %703 = vdwg.mxu0
    %704 = vmatprep.subr.mxu0 0.0
    %705 = vmatpush1.msra.mxu0 %v408
    %706 = vmatprep.subr.mxu0 0.0
    %707 = vmatpush1.msra.mxu0 %v411
    %708 = vmatprep.subr.mxu0 0.0
    %709 = vmatpush1.msra.mxu0 %v414
    %710 = vmatprep.subr.mxu0 0.0
    %711 = vmatpush1.msra.mxu0 %v417
    %712 = vmatprep.subr.mxu0 0.0
    %713 = vmatpush1.msra.mxu0 %v420
    %714 = vmatprep.subr.mxu0 0.0
    %715 = vmatpush1.msra.mxu0 %v423
    %716 = vmatprep.subr.mxu0 0.0
    %717 = vmatpush1.msra.mxu0 %v426
    %718 = vmatprep.subr.mxu0 0.0
    %719 = vmatpush1.msra.mxu0 %v429
    %720 = vmatprep.subr.mxu0 0.0
    %721 = vmatpush1.msra.mxu0 %v432
    %722 = vmatprep.subr.mxu0 0.0
    %723 = vmatpush1.msra.mxu0 %v435
    %724 = vmatprep.subr.mxu0 0.0
    %725 = vmatpush1.msra.mxu0 %v438
    %726 = vmatprep.subr.mxu0 0.0
    %727 = vmatpush1.msra.mxu0 %v441
    %728 = vmatprep.subr.mxu0 0.0
    %729 = vmatpush1.msra.mxu0 %v444
    %730 = vmatprep.subr.mxu0 0.0
    %731 = vmatpush1.msra.mxu0 %v447
    %732 = vmatprep.subr.mxu0 0.0
    %733 = vmatpush1.msra.mxu0 %v450
    %734 = vmatprep.subr.mxu0 0.0
    %735 = vmatpush1.msra.mxu0 %v453
    %736 = vmatprep.subr.mxu0 0.0
    %737 = vmatpush1.msra.mxu0 0.0
    %738 = vmatprep.subr.mxu0 0.0
    %739 = vmatpush1.msra.mxu0 0.0
    %740 = vmatprep.subr.mxu0 0.0
    %741 = vmatpush1.msra.mxu0 0.0
    %742 = vmatprep.subr.mxu0 0.0
    %743 = vmatpush1.msra.mxu0 0.0
    %744 = vmatprep.subr.mxu0 0.0
    %745 = vmatpush1.msra.mxu0 0.0
    %746 = vmatprep.subr.mxu0 0.0
    %747 = vmatpush1.msra.mxu0 0.0
    %748 = vmatprep.subr.mxu0 0.0
    %749 = vmatpush1.msra.mxu0 0.0
    %750 = vmatprep.subr.mxu0 0.0
    %751 = vmatpush1.msra.mxu0 0.0
    %752 = vmatprep.subr.mxu0 0.0
    %753 = vmatpush1.msra.mxu0 0.0
    %754 = vmatprep.subr.mxu0 0.0
    %755 = vmatpush1.msra.mxu0 0.0
    %756 = vmatprep.subr.mxu0 0.0
    %757 = vmatpush1.msra.mxu0 0.0
    %758 = vmatprep.subr.mxu0 0.0
    %759 = vmatpush1.msra.mxu0 0.0
    %760 = vmatprep.subr.mxu0 0.0
    %761 = vmatpush1.msra.mxu0 0.0
    %762 = vmatprep.subr.mxu0 0.0
    %763 = vmatpush1.msra.mxu0 0.0
    %764 = vmatprep.subr.mxu0 0.0
    %765 = vmatpush1.msra.mxu0 0.0
    %766 = vmatprep.subr.mxu0 0.0
    %767 = vmatpush1.msra.mxu0 0.0
    %768 = vmatprep.mubr.f32.mxu0 0.0
    %769 = vmatmul.mubr.f32.gmra.mrb[0].mxu0 %v627
    %v770 = vpop.f32.mrb[0].mxu0
    %v771 = vadd.f32 0.0, %v770
    %v772 = vpop.f32.mrb[0].mxu0
    %773 = vdwg.mxu0
    %v774 = vadd.f32 %v630, %v700
    %v775 = vxor.u32 %v774, 2147483648
    %v776 = vmul.f32 %v775, 1.442695
    %v777 = vpow.pop %v776
    %v778 = vadd.f32 %v777, 1.0
    %v779 = vrcp.pop %v778
    %v780 = vmul.f32 1.0, %v779
    %v781 = vadd.f32 %v631, %v702
    %v782 = vxor.u32 %v781, 2147483648
    %v783 = vmul.f32 %v782, 1.442695
    %v784 = vpow.pop %v783
    %v785 = vadd.f32 %v784, 1.0
    %v786 = vrcp.pop %v785
    %v787 = vmul.f32 1.0, %v786
    %v788 = vadd.f32 %v771, %v618
    %v789 = vmul.f32 %v780, %v788
    %v790 = vadd.f32 %v632, %v789
    %v791 = vtanh.pop %v790
    %v792 = vsub.f32 1.0, %v787
    %v793 = vmul.f32 %v792, %v791
    %v794 = vmul.f32 %v787, %v627
    %v795 = vadd.f32 %v793, %v794
    %s796 = scalar_lea.vmem [#allocation10], 8
    %797 = vst [vmem:[%s796] sm:$0xff] %v795
    %s798 = scalar_lea.vmem [#allocation2], 48
    %v799 = vld [vmem:[%s798] sm:$0xff]
    %v800 = vld [vmem:[%s798 + $0x8] sm:$0xff]
    %v801 = vld [vmem:[%s798 + $0x10] sm:$0xff]
    %802 = vmatprep.subr.mxu0 %v407
    %803 = vmatpush1.msra.mxu0 %v406
    %804 = vmatprep.subr.mxu0 %v410
    %805 = vmatpush1.msra.mxu0 %v409
    %806 = vmatprep.subr.mxu0 %v413
    %807 = vmatpush1.msra.mxu0 %v412
    %808 = vmatprep.subr.mxu0 %v416
    %809 = vmatpush1.msra.mxu0 %v415
    %810 = vmatprep.subr.mxu0 %v419
    %811 = vmatpush1.msra.mxu0 %v418
    %812 = vmatprep.subr.mxu0 %v422
    %813 = vmatpush1.msra.mxu0 %v421
    %814 = vmatprep.subr.mxu0 %v425
    %815 = vmatpush1.msra.mxu0 %v424
    %816 = vmatprep.subr.mxu0 %v428
    %817 = vmatpush1.msra.mxu0 %v427
    %818 = vmatprep.subr.mxu0 %v431
    %819 = vmatpush1.msra.mxu0 %v430
    %820 = vmatprep.subr.mxu0 %v434
    %821 = vmatpush1.msra.mxu0 %v433
    %822 = vmatprep.subr.mxu0 %v437
    %823 = vmatpush1.msra.mxu0 %v436
    %824 = vmatprep.subr.mxu0 %v440
    %825 = vmatpush1.msra.mxu0 %v439
    %826 = vmatprep.subr.mxu0 %v443
    %827 = vmatpush1.msra.mxu0 %v442
    %828 = vmatprep.subr.mxu0 %v446
    %829 = vmatpush1.msra.mxu0 %v445
    %830 = vmatprep.subr.mxu0 %v449
    %831 = vmatpush1.msra.mxu0 %v448
    %832 = vmatprep.subr.mxu0 %v452
    %833 = vmatpush1.msra.mxu0 %v451
    %834 = vmatprep.subr.mxu0 0.0
    %835 = vmatpush1.msra.mxu0 0.0
    %836 = vmatprep.subr.mxu0 0.0
    %837 = vmatpush1.msra.mxu0 0.0
    %838 = vmatprep.subr.mxu0 0.0
    %839 = vmatpush1.msra.mxu0 0.0
    %840 = vmatprep.subr.mxu0 0.0
    %841 = vmatpush1.msra.mxu0 0.0
    %842 = vmatprep.subr.mxu0 0.0
    %843 = vmatpush1.msra.mxu0 0.0
    %844 = vmatprep.subr.mxu0 0.0
    %845 = vmatpush1.msra.mxu0 0.0
    %846 = vmatprep.subr.mxu0 0.0
    %847 = vmatpush1.msra.mxu0 0.0
    %848 = vmatprep.subr.mxu0 0.0
    %849 = vmatpush1.msra.mxu0 0.0
    %850 = vmatprep.subr.mxu0 0.0
    %851 = vmatpush1.msra.mxu0 0.0
    %852 = vmatprep.subr.mxu0 0.0
    %853 = vmatpush1.msra.mxu0 0.0
    %854 = vmatprep.subr.mxu0 0.0
    %855 = vmatpush1.msra.mxu0 0.0
    %856 = vmatprep.subr.mxu0 0.0
    %857 = vmatpush1.msra.mxu0 0.0
    %858 = vmatprep.subr.mxu0 0.0
    %859 = vmatpush1.msra.mxu0 0.0
    %860 = vmatprep.subr.mxu0 0.0
    %861 = vmatpush1.msra.mxu0 0.0
    %862 = vmatprep.subr.mxu0 0.0
    %863 = vmatpush1.msra.mxu0 0.0
    %864 = vmatprep.subr.mxu0 0.0
    %865 = vmatpush1.msra.mxu0 0.0
    %866 = vmatprep.mubr.f32.mxu0 0.0
    %867 = vmatmul.mubr.f32.gmra.mrb[0].mxu0 %v795
    %v868 = vpop.f32.mrb[0].mxu0
    %v869 = vadd.f32 0.0, %v868
    %v870 = vpop.f32.mrb[0].mxu0
    %v871 = vadd.f32 0.0, %v870
    %872 = vdwg.mxu0
    %873 = vmatprep.subr.mxu0 0.0
    %874 = vmatpush1.msra.mxu0 %v408
    %875 = vmatprep.subr.mxu0 0.0
    %876 = vmatpush1.msra.mxu0 %v411
    %877 = vmatprep.subr.mxu0 0.0
    %878 = vmatpush1.msra.mxu0 %v414
    %879 = vmatprep.subr.mxu0 0.0
    %880 = vmatpush1.msra.mxu0 %v417
    %881 = vmatprep.subr.mxu0 0.0
    %882 = vmatpush1.msra.mxu0 %v420
    %883 = vmatprep.subr.mxu0 0.0
    %884 = vmatpush1.msra.mxu0 %v423
    %885 = vmatprep.subr.mxu0 0.0
    %886 = vmatpush1.msra.mxu0 %v426
    %887 = vmatprep.subr.mxu0 0.0
    %888 = vmatpush1.msra.mxu0 %v429
    %889 = vmatprep.subr.mxu0 0.0
    %890 = vmatpush1.msra.mxu0 %v432
    %891 = vmatprep.subr.mxu0 0.0
    %892 = vmatpush1.msra.mxu0 %v435
    %893 = vmatprep.subr.mxu0 0.0
    %894 = vmatpush1.msra.mxu0 %v438
    %895 = vmatprep.subr.mxu0 0.0
    %896 = vmatpush1.msra.mxu0 %v441
    %897 = vmatprep.subr.mxu0 0.0
    %898 = vmatpush1.msra.mxu0 %v444
    %899 = vmatprep.subr.mxu0 0.0
    %900 = vmatpush1.msra.mxu0 %v447
    %901 = vmatprep.subr.mxu0 0.0
    %902 = vmatpush1.msra.mxu0 %v450
    %903 = vmatprep.subr.mxu0 0.0
    %904 = vmatpush1.msra.mxu0 %v453
    %905 = vmatprep.subr.mxu0 0.0
    %906 = vmatpush1.msra.mxu0 0.0
    %907 = vmatprep.subr.mxu0 0.0
    %908 = vmatpush1.msra.mxu0 0.0
    %909 = vmatprep.subr.mxu0 0.0
    %910 = vmatpush1.msra.mxu0 0.0
    %911 = vmatprep.subr.mxu0 0.0
    %912 = vmatpush1.msra.mxu0 0.0
    %913 = vmatprep.subr.mxu0 0.0
    %914 = vmatpush1.msra.mxu0 0.0
    %915 = vmatprep.subr.mxu0 0.0
    %916 = vmatpush1.msra.mxu0 0.0
    %917 = vmatprep.subr.mxu0 0.0
    %918 = vmatpush1.msra.mxu0 0.0
    %919 = vmatprep.subr.mxu0 0.0
    %920 = vmatpush1.msra.mxu0 0.0
    %921 = vmatprep.subr.mxu0 0.0
    %922 = vmatpush1.msra.mxu0 0.0
    %923 = vmatprep.subr.mxu0 0.0
    %924 = vmatpush1.msra.mxu0 0.0
    %925 = vmatprep.subr.mxu0 0.0
    %926 = vmatpush1.msra.mxu0 0.0
    %927 = vmatprep.subr.mxu0 0.0
    %928 = vmatpush1.msra.mxu0 0.0
    %929 = vmatprep.subr.mxu0 0.0
    %930 = vmatpush1.msra.mxu0 0.0
    %931 = vmatprep.subr.mxu0 0.0
    %932 = vmatpush1.msra.mxu0 0.0
    %933 = vmatprep.subr.mxu0 0.0
    %934 = vmatpush1.msra.mxu0 0.0
    %935 = vmatprep.subr.mxu0 0.0
    %936 = vmatpush1.msra.mxu0 0.0
    %937 = vmatprep.mubr.f32.mxu0 0.0
    %938 = vmatmul.mubr.f32.gmra.mrb[0].mxu0 %v795
    %v939 = vpop.f32.mrb[0].mxu0
    %v940 = vadd.f32 0.0, %v939
    %v941 = vpop.f32.mrb[0].mxu0
    %942 = vdwg.mxu0
    %v943 = vadd.f32 %v799, %v869
    %v944 = vxor.u32 %v943, 2147483648
    %v945 = vmul.f32 %v944, 1.442695
    %v946 = vpow.pop %v945
    %v947 = vadd.f32 %v946, 1.0
    %v948 = vrcp.pop %v947
    %v949 = vmul.f32 1.0, %v948
    %v950 = vadd.f32 %v800, %v871
    %v951 = vxor.u32 %v950, 2147483648
    %v952 = vmul.f32 %v951, 1.442695
    %v953 = vpow.pop %v952
    %v954 = vadd.f32 %v953, 1.0
    %v955 = vrcp.pop %v954
    %v956 = vmul.f32 1.0, %v955
    %v957 = vadd.f32 %v940, %v618
    %v958 = vmul.f32 %v949, %v957
    %v959 = vadd.f32 %v801, %v958
    %v960 = vtanh.pop %v959
    %v961 = vsub.f32 1.0, %v956
    %v962 = vmul.f32 %v961, %v960
    %v963 = vmul.f32 %v956, %v795
    %v964 = vadd.f32 %v962, %v963
    %s965 = scalar_lea.vmem [#allocation10], 16
    %966 = vst [vmem:[%s965] sm:$0xff] %v964
    %s967 = scalar_lea.vmem [#allocation2], 72
    %v968 = vld [vmem:[%s967] sm:$0xff]
    %v969 = vld [vmem:[%s967 + $0x8] sm:$0xff]
    %v970 = vld [vmem:[%s967 + $0x10] sm:$0xff]
    %971 = vmatprep.subr.mxu0 %v407
    %972 = vmatpush1.msra.mxu0 %v406
    %973 = vmatprep.subr.mxu0 %v410
    %974 = vmatpush1.msra.mxu0 %v409
    %975 = vmatprep.subr.mxu0 %v413
    %976 = vmatpush1.msra.mxu0 %v412
    %977 = vmatprep.subr.mxu0 %v416
    %978 = vmatpush1.msra.mxu0 %v415
    %979 = vmatprep.subr.mxu0 %v419
    %980 = vmatpush1.msra.mxu0 %v418
    %981 = vmatprep.subr.mxu0 %v422
    %982 = vmatpush1.msra.mxu0 %v421
    %983 = vmatprep.subr.mxu0 %v425
    %984 = vmatpush1.msra.mxu0 %v424
    %985 = vmatprep.subr.mxu0 %v428
    %986 = vmatpush1.msra.mxu0 %v427
    %987 = vmatprep.subr.mxu0 %v431
    %988 = vmatpush1.msra.mxu0 %v430
    %989 = vmatprep.subr.mxu0 %v434
    %990 = vmatpush1.msra.mxu0 %v433
    %991 = vmatprep.subr.mxu0 %v437
    %992 = vmatpush1.msra.mxu0 %v436
    %993 = vmatprep.subr.mxu0 %v440
    %994 = vmatpush1.msra.mxu0 %v439
    %995 = vmatprep.subr.mxu0 %v443
    %996 = vmatpush1.msra.mxu0 %v442
    %997 = vmatprep.subr.mxu0 %v446
    %998 = vmatpush1.msra.mxu0 %v445
    %999 = vmatprep.subr.mxu0 %v449
    %1000 = vmatpush1.msra.mxu0 %v448
    %1001 = vmatprep.subr.mxu0 %v452
    %1002 = vmatpush1.msra.mxu0 %v451
    %1003 = vmatprep.subr.mxu0 0.0
    %1004 = vmatpush1.msra.mxu0 0.0
    %1005 = vmatprep.subr.mxu0 0.0
    %1006 = vmatpush1.msra.mxu0 0.0
    %1007 = vmatprep.subr.mxu0 0.0
    %1008 = vmatpush1.msra.mxu0 0.0
    %1009 = vmatprep.subr.mxu0 0.0
    %1010 = vmatpush1.msra.mxu0 0.0
    %1011 = vmatprep.subr.mxu0 0.0
    %1012 = vmatpush1.msra.mxu0 0.0
    %1013 = vmatprep.subr.mxu0 0.0
    %1014 = vmatpush1.msra.mxu0 0.0
    %1015 = vmatprep.subr.mxu0 0.0
    %1016 = vmatpush1.msra.mxu0 0.0
    %1017 = vmatprep.subr.mxu0 0.0
    %1018 = vmatpush1.msra.mxu0 0.0
    %1019 = vmatprep.subr.mxu0 0.0
    %1020 = vmatpush1.msra.mxu0 0.0
    %1021 = vmatprep.subr.mxu0 0.0
    %1022 = vmatpush1.msra.mxu0 0.0
    %1023 = vmatprep.subr.mxu0 0.0
    %1024 = vmatpush1.msra.mxu0 0.0
    %1025 = vmatprep.subr.mxu0 0.0
    %1026 = vmatpush1.msra.mxu0 0.0
    %1027 = vmatprep.subr.mxu0 0.0
    %1028 = vmatpush1.msra.mxu0 0.0
    %1029 = vmatprep.subr.mxu0 0.0
    %1030 = vmatpush1.msra.mxu0 0.0
    %1031 = vmatprep.subr.mxu0 0.0
    %1032 = vmatpush1.msra.mxu0 0.0
    %1033 = vmatprep.subr.mxu0 0.0
    %1034 = vmatpush1.msra.mxu0 0.0
    %1035 = vmatprep.mubr.f32.mxu0 0.0
    %1036 = vmatmul.mubr.f32.gmra.mrb[0].mxu0 %v964
    %v1037 = vpop.f32.mrb[0].mxu0
    %v1038 = vadd.f32 0.0, %v1037
    %v1039 = vpop.f32.mrb[0].mxu0
    %v1040 = vadd.f32 0.0, %v1039
    %1041 = vdwg.mxu0
    %1042 = vmatprep.subr.mxu0 0.0
    %1043 = vmatpush1.msra.mxu0 %v408
    %1044 = vmatprep.subr.mxu0 0.0
    %1045 = vmatpush1.msra.mxu0 %v411
    %1046 = vmatprep.subr.mxu0 0.0
    %1047 = vmatpush1.msra.mxu0 %v414
    %1048 = vmatprep.subr.mxu0 0.0
    %1049 = vmatpush1.msra.mxu0 %v417
    %1050 = vmatprep.subr.mxu0 0.0
    %1051 = vmatpush1.msra.mxu0 %v420
    %1052 = vmatprep.subr.mxu0 0.0
    %1053 = vmatpush1.msra.mxu0 %v423
    %1054 = vmatprep.subr.mxu0 0.0
    %1055 = vmatpush1.msra.mxu0 %v426
    %1056 = vmatprep.subr.mxu0 0.0
    %1057 = vmatpush1.msra.mxu0 %v429
    %1058 = vmatprep.subr.mxu0 0.0
    %1059 = vmatpush1.msra.mxu0 %v432
    %1060 = vmatprep.subr.mxu0 0.0
    %1061 = vmatpush1.msra.mxu0 %v435
    %1062 = vmatprep.subr.mxu0 0.0
    %1063 = vmatpush1.msra.mxu0 %v438
    %1064 = vmatprep.subr.mxu0 0.0
    %1065 = vmatpush1.msra.mxu0 %v441
    %1066 = vmatprep.subr.mxu0 0.0
    %1067 = vmatpush1.msra.mxu0 %v444
    %1068 = vmatprep.subr.mxu0 0.0
    %1069 = vmatpush1.msra.mxu0 %v447
    %1070 = vmatprep.subr.mxu0 0.0
    %1071 = vmatpush1.msra.mxu0 %v450
    %1072 = vmatprep.subr.mxu0 0.0
    %1073 = vmatpush1.msra.mxu0 %v453
    %1074 = vmatprep.subr.mxu0 0.0
    %1075 = vmatpush1.msra.mxu0 0.0
    %1076 = vmatprep.subr.mxu0 0.0
    %1077 = vmatpush1.msra.mxu0 0.0
    %1078 = vmatprep.subr.mxu0 0.0
    %1079 = vmatpush1.msra.mxu0 0.0
    %1080 = vmatprep.subr.mxu0 0.0
    %1081 = vmatpush1.msra.mxu0 0.0
    %1082 = vmatprep.subr.mxu0 0.0
    %1083 = vmatpush1.msra.mxu0 0.0
    %1084 = vmatprep.subr.mxu0 0.0
    %1085 = vmatpush1.msra.mxu0 0.0
    %1086 = vmatprep.subr.mxu0 0.0
    %1087 = vmatpush1.msra.mxu0 0.0
    %1088 = vmatprep.subr.mxu0 0.0
    %1089 = vmatpush1.msra.mxu0 0.0
    %1090 = vmatprep.subr.mxu0 0.0
    %1091 = vmatpush1.msra.mxu0 0.0
    %1092 = vmatprep.subr.mxu0 0.0
    %1093 = vmatpush1.msra.mxu0 0.0
    %1094 = vmatprep.subr.mxu0 0.0
    %1095 = vmatpush1.msra.mxu0 0.0
    %1096 = vmatprep.subr.mxu0 0.0
    %1097 = vmatpush1.msra.mxu0 0.0
    %1098 = vmatprep.subr.mxu0 0.0
    %1099 = vmatpush1.msra.mxu0 0.0
    %1100 = vmatprep.subr.mxu0 0.0
    %1101 = vmatpush1.msra.mxu0 0.0
    %1102 = vmatprep.subr.mxu0 0.0
    %1103 = vmatpush1.msra.mxu0 0.0
    %1104 = vmatprep.subr.mxu0 0.0
    %1105 = vmatpush1.msra.mxu0 0.0
    %1106 = vmatprep.mubr.f32.mxu0 0.0
    %1107 = vmatmul.mubr.f32.gmra.mrb[0].mxu0 %v964
    %v1108 = vpop.f32.mrb[0].mxu0
    %v1109 = vadd.f32 0.0, %v1108
    %v1110 = vpop.f32.mrb[0].mxu0
    %1111 = vdwg.mxu0
    %v1112 = vadd.f32 %v968, %v1038
    %v1113 = vxor.u32 %v1112, 2147483648
    %v1114 = vmul.f32 %v1113, 1.442695
    %v1115 = vpow.pop %v1114
    %v1116 = vadd.f32 %v1115, 1.0
    %v1117 = vrcp.pop %v1116
    %v1118 = vmul.f32 1.0, %v1117
    %v1119 = vadd.f32 %v969, %v1040
    %v1120 = vxor.u32 %v1119, 2147483648
    %v1121 = vmul.f32 %v1120, 1.442695
    %v1122 = vpow.pop %v1121
    %v1123 = vadd.f32 %v1122, 1.0
    %v1124 = vrcp.pop %v1123
    %v1125 = vmul.f32 1.0, %v1124
    %v1126 = vadd.f32 %v1109, %v618
    %v1127 = vmul.f32 %v1118, %v1126
    %v1128 = vadd.f32 %v970, %v1127
    %v1129 = vtanh.pop %v1128
    %v1130 = vsub.f32 1.0, %v1125
    %v1131 = vmul.f32 %v1130, %v1129
    %v1132 = vmul.f32 %v1125, %v964
    %v1133 = vadd.f32 %v1131, %v1132
    %s1134 = scalar_lea.vmem [#allocation10], 24
    %1135 = vst [vmem:[%s1134] sm:$0xff] %v1133
    %s1136 = scalar_lea.vmem [#allocation2], 96
    %v1137 = vld [vmem:[%s1136] sm:$0xff]
    %v1138 = vld [vmem:[%s1136 + $0x8] sm:$0xff]
    %v1139 = vld [vmem:[%s1136 + $0x10] sm:$0xff]
    %1140 = vmatprep.subr.mxu0 %v407
    %1141 = vmatpush1.msra.mxu0 %v406
    %1142 = vmatprep.subr.mxu0 %v410
    %1143 = vmatpush1.msra.mxu0 %v409
    %1144 = vmatprep.subr.mxu0 %v413
    %1145 = vmatpush1.msra.mxu0 %v412
    %1146 = vmatprep.subr.mxu0 %v416
    %1147 = vmatpush1.msra.mxu0 %v415
    %1148 = vmatprep.subr.mxu0 %v419
    %1149 = vmatpush1.msra.mxu0 %v418
    %1150 = vmatprep.subr.mxu0 %v422
    %1151 = vmatpush1.msra.mxu0 %v421
    %1152 = vmatprep.subr.mxu0 %v425
    %1153 = vmatpush1.msra.mxu0 %v424
    %1154 = vmatprep.subr.mxu0 %v428
    %1155 = vmatpush1.msra.mxu0 %v427
    %1156 = vmatprep.subr.mxu0 %v431
    %1157 = vmatpush1.msra.mxu0 %v430
    %1158 = vmatprep.subr.mxu0 %v434
    %1159 = vmatpush1.msra.mxu0 %v433
    %1160 = vmatprep.subr.mxu0 %v437
    %1161 = vmatpush1.msra.mxu0 %v436
    %1162 = vmatprep.subr.mxu0 %v440
    %1163 = vmatpush1.msra.mxu0 %v439
    %1164 = vmatprep.subr.mxu0 %v443
    %1165 = vmatpush1.msra.mxu0 %v442
    %1166 = vmatprep.subr.mxu0 %v446
    %1167 = vmatpush1.msra.mxu0 %v445
    %1168 = vmatprep.subr.mxu0 %v449
    %1169 = vmatpush1.msra.mxu0 %v448
    %1170 = vmatprep.subr.mxu0 %v452
    %1171 = vmatpush1.msra.mxu0 %v451
    %1172 = vmatprep.subr.mxu0 0.0
    %1173 = vmatpush1.msra.mxu0 0.0
    %1174 = vmatprep.subr.mxu0 0.0
    %1175 = vmatpush1.msra.mxu0 0.0
    %1176 = vmatprep.subr.mxu0 0.0
    %1177 = vmatpush1.msra.mxu0 0.0
    %1178 = vmatprep.subr.mxu0 0.0
    %1179 = vmatpush1.msra.mxu0 0.0
    %1180 = vmatprep.subr.mxu0 0.0
    %1181 = vmatpush1.msra.mxu0 0.0
    %1182 = vmatprep.subr.mxu0 0.0
    %1183 = vmatpush1.msra.mxu0 0.0
    %1184 = vmatprep.subr.mxu0 0.0
    %1185 = vmatpush1.msra.mxu0 0.0
    %1186 = vmatprep.subr.mxu0 0.0
    %1187 = vmatpush1.msra.mxu0 0.0
    %1188 = vmatprep.subr.mxu0 0.0
    %1189 = vmatpush1.msra.mxu0 0.0
    %1190 = vmatprep.subr.mxu0 0.0
    %1191 = vmatpush1.msra.mxu0 0.0
    %1192 = vmatprep.subr.mxu0 0.0
    %1193 = vmatpush1.msra.mxu0 0.0
    %1194 = vmatprep.subr.mxu0 0.0
    %1195 = vmatpush1.msra.mxu0 0.0
    %1196 = vmatprep.subr.mxu0 0.0
    %1197 = vmatpush1.msra.mxu0 0.0
    %1198 = vmatprep.subr.mxu0 0.0
    %1199 = vmatpush1.msra.mxu0 0.0
    %1200 = vmatprep.subr.mxu0 0.0
    %1201 = vmatpush1.msra.mxu0 0.0
    %1202 = vmatprep.subr.mxu0 0.0
    %1203 = vmatpush1.msra.mxu0 0.0
    %1204 = vmatprep.mubr.f32.mxu0 0.0
    %1205 = vmatmul.mubr.f32.gmra.mrb[0].mxu0 %v1133
    %v1206 = vpop.f32.mrb[0].mxu0
    %v1207 = vadd.f32 0.0, %v1206
    %v1208 = vpop.f32.mrb[0].mxu0
    %v1209 = vadd.f32 0.0, %v1208
    %1210 = vdwg.mxu0
    %1211 = vmatprep.subr.mxu0 0.0
    %1212 = vmatpush1.msra.mxu0 %v408
    %1213 = vmatprep.subr.mxu0 0.0
    %1214 = vmatpush1.msra.mxu0 %v411
    %1215 = vmatprep.subr.mxu0 0.0
    %1216 = vmatpush1.msra.mxu0 %v414
    %1217 = vmatprep.subr.mxu0 0.0
    %1218 = vmatpush1.msra.mxu0 %v417
    %1219 = vmatprep.subr.mxu0 0.0
    %1220 = vmatpush1.msra.mxu0 %v420
    %1221 = vmatprep.subr.mxu0 0.0
    %1222 = vmatpush1.msra.mxu0 %v423
    %1223 = vmatprep.subr.mxu0 0.0
    %1224 = vmatpush1.msra.mxu0 %v426
    %1225 = vmatprep.subr.mxu0 0.0
    %1226 = vmatpush1.msra.mxu0 %v429
    %1227 = vmatprep.subr.mxu0 0.0
    %1228 = vmatpush1.msra.mxu0 %v432
    %1229 = vmatprep.subr.mxu0 0.0
    %1230 = vmatpush1.msra.mxu0 %v435
    %1231 = vmatprep.subr.mxu0 0.0
    %1232 = vmatpush1.msra.mxu0 %v438
    %1233 = vmatprep.subr.mxu0 0.0
    %1234 = vmatpush1.msra.mxu0 %v441
    %1235 = vmatprep.subr.mxu0 0.0
    %1236 = vmatpush1.msra.mxu0 %v444
    %1237 = vmatprep.subr.mxu0 0.0
    %1238 = vmatpush1.msra.mxu0 %v447
    %1239 = vmatprep.subr.mxu0 0.0
    %1240 = vmatpush1.msra.mxu0 %v450
    %1241 = vmatprep.subr.mxu0 0.0
    %1242 = vmatpush1.msra.mxu0 %v453
    %1243 = vmatprep.subr.mxu0 0.0
    %1244 = vmatpush1.msra.mxu0 0.0
    %1245 = vmatprep.subr.mxu0 0.0
    %1246 = vmatpush1.msra.mxu0 0.0
    %1247 = vmatprep.subr.mxu0 0.0
    %1248 = vmatpush1.msra.mxu0 0.0
    %1249 = vmatprep.subr.mxu0 0.0
    %1250 = vmatpush1.msra.mxu0 0.0
    %1251 = vmatprep.subr.mxu0 0.0
    %1252 = vmatpush1.msra.mxu0 0.0
    %1253 = vmatprep.subr.mxu0 0.0
    %1254 = vmatpush1.msra.mxu0 0.0
    %1255 = vmatprep.subr.mxu0 0.0
    %1256 = vmatpush1.msra.mxu0 0.0
    %1257 = vmatprep.subr.mxu0 0.0
    %1258 = vmatpush1.msra.mxu0 0.0
    %1259 = vmatprep.subr.mxu0 0.0
    %1260 = vmatpush1.msra.mxu0 0.0
    %1261 = vmatprep.subr.mxu0 0.0
    %1262 = vmatpush1.msra.mxu0 0.0
    %1263 = vmatprep.subr.mxu0 0.0
    %1264 = vmatpush1.msra.mxu0 0.0
    %1265 = vmatprep.subr.mxu0 0.0
    %1266 = vmatpush1.msra.mxu0 0.0
    %1267 = vmatprep.subr.mxu0 0.0
    %1268 = vmatpush1.msra.mxu0 0.0
    %1269 = vmatprep.subr.mxu0 0.0
    %1270 = vmatpush1.msra.mxu0 0.0
    %1271 = vmatprep.subr.mxu0 0.0
    %1272 = vmatpush1.msra.mxu0 0.0
    %1273 = vmatprep.subr.mxu0 0.0
    %1274 = vmatpush1.msra.mxu0 0.0
    %1275 = vmatprep.mubr.f32.mxu0 0.0
    %1276 = vmatmul.mubr.f32.gmra.mrb[0].mxu0 %v1133
    %v1277 = vpop.f32.mrb[0].mxu0
    %v1278 = vadd.f32 0.0, %v1277
    %v1279 = vpop.f32.mrb[0].mxu0
    %1280 = vdwg.mxu0
    %v1281 = vadd.f32 %v1137, %v1207
    %v1282 = vxor.u32 %v1281, 2147483648
    %v1283 = vmul.f32 %v1282, 1.442695
    %v1284 = vpow.pop %v1283
    %v1285 = vadd.f32 %v1284, 1.0
    %v1286 = vrcp.pop %v1285
    %v1287 = vmul.f32 1.0, %v1286
    %v1288 = vadd.f32 %v1138, %v1209
    %v1289 = vxor.u32 %v1288, 2147483648
    %v1290 = vmul.f32 %v1289, 1.442695
    %v1291 = vpow.pop %v1290
    %v1292 = vadd.f32 %v1291, 1.0
    %v1293 = vrcp.pop %v1292
    %v1294 = vmul.f32 1.0, %v1293
    %v1295 = vadd.f32 %v1278, %v618
    %v1296 = vmul.f32 %v1287, %v1295
    %v1297 = vadd.f32 %v1139, %v1296
    %v1298 = vtanh.pop %v1297
    %v1299 = vsub.f32 1.0, %v1294
    %v1300 = vmul.f32 %v1299, %v1298
    %v1301 = vmul.f32 %v1294, %v1133
    %v1302 = vadd.f32 %v1300, %v1301
    %s1303 = scalar_lea.vmem [#allocation10], 32
    %1304 = vst [vmem:[%s1303] sm:$0xff] %v1302
    %s1305 = scalar_lea.vmem [#allocation2], 120
    %v1306 = vld [vmem:[%s1305] sm:$0xff]
    %v1307 = vld [vmem:[%s1305 + $0x8] sm:$0xff]
    %v1308 = vld [vmem:[%s1305 + $0x10] sm:$0xff]
    %1309 = vmatprep.subr.mxu0 %v407
    %1310 = vmatpush1.msra.mxu0 %v406
    %1311 = vmatprep.subr.mxu0 %v410
    %1312 = vmatpush1.msra.mxu0 %v409
    %1313 = vmatprep.subr.mxu0 %v413
    %1314 = vmatpush1.msra.mxu0 %v412
    %1315 = vmatprep.subr.mxu0 %v416
    %1316 = vmatpush1.msra.mxu0 %v415
    %1317 = vmatprep.subr.mxu0 %v419
    %1318 = vmatpush1.msra.mxu0 %v418
    %1319 = vmatprep.subr.mxu0 %v422
    %1320 = vmatpush1.msra.mxu0 %v421
    %1321 = vmatprep.subr.mxu0 %v425
    %1322 = vmatpush1.msra.mxu0 %v424
    %1323 = vmatprep.subr.mxu0 %v428
    %1324 = vmatpush1.msra.mxu0 %v427
    %1325 = vmatprep.subr.mxu0 %v431
    %1326 = vmatpush1.msra.mxu0 %v430
    %1327 = vmatprep.subr.mxu0 %v434
    %1328 = vmatpush1.msra.mxu0 %v433
    %1329 = vmatprep.subr.mxu0 %v437
    %1330 = vmatpush1.msra.mxu0 %v436
    %1331 = vmatprep.subr.mxu0 %v440
    %1332 = vmatpush1.msra.mxu0 %v439
    %1333 = vmatprep.subr.mxu0 %v443
    %1334 = vmatpush1.msra.mxu0 %v442
    %1335 = vmatprep.subr.mxu0 %v446
    %1336 = vmatpush1.msra.mxu0 %v445
    %1337 = vmatprep.subr.mxu0 %v449
    %1338 = vmatpush1.msra.mxu0 %v448
    %1339 = vmatprep.subr.mxu0 %v452
    %1340 = vmatpush1.msra.mxu0 %v451
    %1341 = vmatprep.subr.mxu0 0.0
    %1342 = vmatpush1.msra.mxu0 0.0
    %1343 = vmatprep.subr.mxu0 0.0
    %1344 = vmatpush1.msra.mxu0 0.0
    %1345 = vmatprep.subr.mxu0 0.0
    %1346 = vmatpush1.msra.mxu0 0.0
    %1347 = vmatprep.subr.mxu0 0.0
    %1348 = vmatpush1.msra.mxu0 0.0
    %1349 = vmatprep.subr.mxu0 0.0
    %1350 = vmatpush1.msra.mxu0 0.0
    %1351 = vmatprep.subr.mxu0 0.0
    %1352 = vmatpush1.msra.mxu0 0.0
    %1353 = vmatprep.subr.mxu0 0.0
    %1354 = vmatpush1.msra.mxu0 0.0
    %1355 = vmatprep.subr.mxu0 0.0
    %1356 = vmatpush1.msra.mxu0 0.0
    %1357 = vmatprep.subr.mxu0 0.0
    %1358 = vmatpush1.msra.mxu0 0.0
    %1359 = vmatprep.subr.mxu0 0.0
    %1360 = vmatpush1.msra.mxu0 0.0
    %1361 = vmatprep.subr.mxu0 0.0
    %1362 = vmatpush1.msra.mxu0 0.0
    %1363 = vmatprep.subr.mxu0 0.0
    %1364 = vmatpush1.msra.mxu0 0.0
    %1365 = vmatprep.subr.mxu0 0.0
    %1366 = vmatpush1.msra.mxu0 0.0
    %1367 = vmatprep.subr.mxu0 0.0
    %1368 = vmatpush1.msra.mxu0 0.0
    %1369 = vmatprep.subr.mxu0 0.0
    %1370 = vmatpush1.msra.mxu0 0.0
    %1371 = vmatprep.subr.mxu0 0.0
    %1372 = vmatpush1.msra.mxu0 0.0
    %1373 = vmatprep.mubr.f32.mxu0 0.0
    %1374 = vmatmul.mubr.f32.gmra.mrb[0].mxu0 %v1302
    %v1375 = vpop.f32.mrb[0].mxu0
    %v1376 = vadd.f32 0.0, %v1375
    %v1377 = vpop.f32.mrb[0].mxu0
    %v1378 = vadd.f32 0.0, %v1377
    %1379 = vdwg.mxu0
    %1380 = vmatprep.subr.mxu0 0.0
    %1381 = vmatpush1.msra.mxu0 %v408
    %1382 = vmatprep.subr.mxu0 0.0
    %1383 = vmatpush1.msra.mxu0 %v411
    %1384 = vmatprep.subr.mxu0 0.0
    %1385 = vmatpush1.msra.mxu0 %v414
    %1386 = vmatprep.subr.mxu0 0.0
    %1387 = vmatpush1.msra.mxu0 %v417
    %1388 = vmatprep.subr.mxu0 0.0
    %1389 = vmatpush1.msra.mxu0 %v420
    %1390 = vmatprep.subr.mxu0 0.0
    %1391 = vmatpush1.msra.mxu0 %v423
    %1392 = vmatprep.subr.mxu0 0.0
    %1393 = vmatpush1.msra.mxu0 %v426
    %1394 = vmatprep.subr.mxu0 0.0
    %1395 = vmatpush1.msra.mxu0 %v429
    %1396 = vmatprep.subr.mxu0 0.0
    %1397 = vmatpush1.msra.mxu0 %v432
    %1398 = vmatprep.subr.mxu0 0.0
    %1399 = vmatpush1.msra.mxu0 %v435
    %1400 = vmatprep.subr.mxu0 0.0
    %1401 = vmatpush1.msra.mxu0 %v438
    %1402 = vmatprep.subr.mxu0 0.0
    %1403 = vmatpush1.msra.mxu0 %v441
    %1404 = vmatprep.subr.mxu0 0.0
    %1405 = vmatpush1.msra.mxu0 %v444
    %1406 = vmatprep.subr.mxu0 0.0
    %1407 = vmatpush1.msra.mxu0 %v447
    %1408 = vmatprep.subr.mxu0 0.0
    %1409 = vmatpush1.msra.mxu0 %v450
    %1410 = vmatprep.subr.mxu0 0.0
    %1411 = vmatpush1.msra.mxu0 %v453
    %1412 = vmatprep.subr.mxu0 0.0
    %1413 = vmatpush1.msra.mxu0 0.0
    %1414 = vmatprep.subr.mxu0 0.0
    %1415 = vmatpush1.msra.mxu0 0.0
    %1416 = vmatprep.subr.mxu0 0.0
    %1417 = vmatpush1.msra.mxu0 0.0
    %1418 = vmatprep.subr.mxu0 0.0
    %1419 = vmatpush1.msra.mxu0 0.0
    %1420 = vmatprep.subr.mxu0 0.0
    %1421 = vmatpush1.msra.mxu0 0.0
    %1422 = vmatprep.subr.mxu0 0.0
    %1423 = vmatpush1.msra.mxu0 0.0
    %1424 = vmatprep.subr.mxu0 0.0
    %1425 = vmatpush1.msra.mxu0 0.0
    %1426 = vmatprep.subr.mxu0 0.0
    %1427 = vmatpush1.msra.mxu0 0.0
    %1428 = vmatprep.subr.mxu0 0.0
    %1429 = vmatpush1.msra.mxu0 0.0
    %1430 = vmatprep.subr.mxu0 0.0
    %1431 = vmatpush1.msra.mxu0 0.0
    %1432 = vmatprep.subr.mxu0 0.0
    %1433 = vmatpush1.msra.mxu0 0.0
    %1434 = vmatprep.subr.mxu0 0.0
    %1435 = vmatpush1.msra.mxu0 0.0
    %1436 = vmatprep.subr.mxu0 0.0
    %1437 = vmatpush1.msra.mxu0 0.0
    %1438 = vmatprep.subr.mxu0 0.0
    %1439 = vmatpush1.msra.mxu0 0.0
    %1440 = vmatprep.subr.mxu0 0.0
    %1441 = vmatpush1.msra.mxu0 0.0
    %1442 = vmatprep.subr.mxu0 0.0
    %1443 = vmatpush1.msra.mxu0 0.0
    %1444 = vmatprep.mubr.f32.mxu0 0.0
    %1445 = vmatmul.mubr.f32.gmra.mrb[0].mxu0 %v1302
    %v1446 = vpop.f32.mrb[0].mxu0
    %v1447 = vadd.f32 0.0, %v1446
    %v1448 = vpop.f32.mrb[0].mxu0
    %1449 = vdwg.mxu0
    %v1450 = vadd.f32 %v1306, %v1376
    %v1451 = vxor.u32 %v1450, 2147483648
    %v1452 = vmul.f32 %v1451, 1.442695
    %v1453 = vpow.pop %v1452
    %v1454 = vadd.f32 %v1453, 1.0
    %v1455 = vrcp.pop %v1454
    %v1456 = vmul.f32 1.0, %v1455
    %v1457 = vadd.f32 %v1307, %v1378
    %v1458 = vxor.u32 %v1457, 2147483648
    %v1459 = vmul.f32 %v1458, 1.442695
    %v1460 = vpow.pop %v1459
    %v1461 = vadd.f32 %v1460, 1.0
    %v1462 = vrcp.pop %v1461
    %v1463 = vmul.f32 1.0, %v1462
    %v1464 = vadd.f32 %v1447, %v618
    %v1465 = vmul.f32 %v1456, %v1464
    %v1466 = vadd.f32 %v1308, %v1465
    %v1467 = vtanh.pop %v1466
    %v1468 = vsub.f32 1.0, %v1463
    %v1469 = vmul.f32 %v1468, %v1467
    %v1470 = vmul.f32 %v1463, %v1302
    %v1471 = vadd.f32 %v1469, %v1470
    %s1472 = scalar_lea.vmem [#allocation10], 40
    %1473 = vst [vmem:[%s1472] sm:$0xff] %v1471
    %s1474 = scalar_lea.vmem [#allocation2], 144
    %v1475 = vld [vmem:[%s1474] sm:$0xff]
    %v1476 = vld [vmem:[%s1474 + $0x8] sm:$0xff]
    %v1477 = vld [vmem:[%s1474 + $0x10] sm:$0xff]
    %1478 = vmatprep.subr.mxu0 %v407
    %1479 = vmatpush1.msra.mxu0 %v406
    %1480 = vmatprep.subr.mxu0 %v410
    %1481 = vmatpush1.msra.mxu0 %v409
    %1482 = vmatprep.subr.mxu0 %v413
    %1483 = vmatpush1.msra.mxu0 %v412
    %1484 = vmatprep.subr.mxu0 %v416
    %1485 = vmatpush1.msra.mxu0 %v415
    %1486 = vmatprep.subr.mxu0 %v419
    %1487 = vmatpush1.msra.mxu0 %v418
    %1488 = vmatprep.subr.mxu0 %v422
    %1489 = vmatpush1.msra.mxu0 %v421
    %1490 = vmatprep.subr.mxu0 %v425
    %1491 = vmatpush1.msra.mxu0 %v424
    %1492 = vmatprep.subr.mxu0 %v428
    %1493 = vmatpush1.msra.mxu0 %v427
    %1494 = vmatprep.subr.mxu0 %v431
    %1495 = vmatpush1.msra.mxu0 %v430
    %1496 = vmatprep.subr.mxu0 %v434
    %1497 = vmatpush1.msra.mxu0 %v433
    %1498 = vmatprep.subr.mxu0 %v437
    %1499 = vmatpush1.msra.mxu0 %v436
    %1500 = vmatprep.subr.mxu0 %v440
    %1501 = vmatpush1.msra.mxu0 %v439
    %1502 = vmatprep.subr.mxu0 %v443
    %1503 = vmatpush1.msra.mxu0 %v442
    %1504 = vmatprep.subr.mxu0 %v446
    %1505 = vmatpush1.msra.mxu0 %v445
    %1506 = vmatprep.subr.mxu0 %v449
    %1507 = vmatpush1.msra.mxu0 %v448
    %1508 = vmatprep.subr.mxu0 %v452
    %1509 = vmatpush1.msra.mxu0 %v451
    %1510 = vmatprep.subr.mxu0 0.0
    %1511 = vmatpush1.msra.mxu0 0.0
    %1512 = vmatprep.subr.mxu0 0.0
    %1513 = vmatpush1.msra.mxu0 0.0
    %1514 = vmatprep.subr.mxu0 0.0
    %1515 = vmatpush1.msra.mxu0 0.0
    %1516 = vmatprep.subr.mxu0 0.0
    %1517 = vmatpush1.msra.mxu0 0.0
    %1518 = vmatprep.subr.mxu0 0.0
    %1519 = vmatpush1.msra.mxu0 0.0
    %1520 = vmatprep.subr.mxu0 0.0
    %1521 = vmatpush1.msra.mxu0 0.0
    %1522 = vmatprep.subr.mxu0 0.0
    %1523 = vmatpush1.msra.mxu0 0.0
    %1524 = vmatprep.subr.mxu0 0.0
    %1525 = vmatpush1.msra.mxu0 0.0
    %1526 = vmatprep.subr.mxu0 0.0
    %1527 = vmatpush1.msra.mxu0 0.0
    %1528 = vmatprep.subr.mxu0 0.0
    %1529 = vmatpush1.msra.mxu0 0.0
    %1530 = vmatprep.subr.mxu0 0.0
    %1531 = vmatpush1.msra.mxu0 0.0
    %1532 = vmatprep.subr.mxu0 0.0
    %1533 = vmatpush1.msra.mxu0 0.0
    %1534 = vmatprep.subr.mxu0 0.0
    %1535 = vmatpush1.msra.mxu0 0.0
    %1536 = vmatprep.subr.mxu0 0.0
    %1537 = vmatpush1.msra.mxu0 0.0
    %1538 = vmatprep.subr.mxu0 0.0
    %1539 = vmatpush1.msra.mxu0 0.0
    %1540 = vmatprep.subr.mxu0 0.0
    %1541 = vmatpush1.msra.mxu0 0.0
    %1542 = vmatprep.mubr.f32.mxu0 0.0
    %1543 = vmatmul.mubr.f32.gmra.mrb[0].mxu0 %v1471
    %v1544 = vpop.f32.mrb[0].mxu0
    %v1545 = vadd.f32 0.0, %v1544
    %v1546 = vpop.f32.mrb[0].mxu0
    %v1547 = vadd.f32 0.0, %v1546
    %1548 = vdwg.mxu0
    %1549 = vmatprep.subr.mxu0 0.0
    %1550 = vmatpush1.msra.mxu0 %v408
    %1551 = vmatprep.subr.mxu0 0.0
    %1552 = vmatpush1.msra.mxu0 %v411
    %1553 = vmatprep.subr.mxu0 0.0
    %1554 = vmatpush1.msra.mxu0 %v414
    %1555 = vmatprep.subr.mxu0 0.0
    %1556 = vmatpush1.msra.mxu0 %v417
    %1557 = vmatprep.subr.mxu0 0.0
    %1558 = vmatpush1.msra.mxu0 %v420
    %1559 = vmatprep.subr.mxu0 0.0
    %1560 = vmatpush1.msra.mxu0 %v423
    %1561 = vmatprep.subr.mxu0 0.0
    %1562 = vmatpush1.msra.mxu0 %v426
    %1563 = vmatprep.subr.mxu0 0.0
    %1564 = vmatpush1.msra.mxu0 %v429
    %1565 = vmatprep.subr.mxu0 0.0
    %1566 = vmatpush1.msra.mxu0 %v432
    %1567 = vmatprep.subr.mxu0 0.0
    %1568 = vmatpush1.msra.mxu0 %v435
    %1569 = vmatprep.subr.mxu0 0.0
    %1570 = vmatpush1.msra.mxu0 %v438
    %1571 = vmatprep.subr.mxu0 0.0
    %1572 = vmatpush1.msra.mxu0 %v441
    %1573 = vmatprep.subr.mxu0 0.0
    %1574 = vmatpush1.msra.mxu0 %v444
    %1575 = vmatprep.subr.mxu0 0.0
    %1576 = vmatpush1.msra.mxu0 %v447
    %1577 = vmatprep.subr.mxu0 0.0
    %1578 = vmatpush1.msra.mxu0 %v450
    %1579 = vmatprep.subr.mxu0 0.0
    %1580 = vmatpush1.msra.mxu0 %v453
    %1581 = vmatprep.subr.mxu0 0.0
    %1582 = vmatpush1.msra.mxu0 0.0
    %1583 = vmatprep.subr.mxu0 0.0
    %1584 = vmatpush1.msra.mxu0 0.0
    %1585 = vmatprep.subr.mxu0 0.0
    %1586 = vmatpush1.msra.mxu0 0.0
    %1587 = vmatprep.subr.mxu0 0.0
    %1588 = vmatpush1.msra.mxu0 0.0
    %1589 = vmatprep.subr.mxu0 0.0
    %1590 = vmatpush1.msra.mxu0 0.0
    %1591 = vmatprep.subr.mxu0 0.0
    %1592 = vmatpush1.msra.mxu0 0.0
    %1593 = vmatprep.subr.mxu0 0.0
    %1594 = vmatpush1.msra.mxu0 0.0
    %1595 = vmatprep.subr.mxu0 0.0
    %1596 = vmatpush1.msra.mxu0 0.0
    %1597 = vmatprep.subr.mxu0 0.0
    %1598 = vmatpush1.msra.mxu0 0.0
    %1599 = vmatprep.subr.mxu0 0.0
    %1600 = vmatpush1.msra.mxu0 0.0
    %1601 = vmatprep.subr.mxu0 0.0
    %1602 = vmatpush1.msra.mxu0 0.0
    %1603 = vmatprep.subr.mxu0 0.0
    %1604 = vmatpush1.msra.mxu0 0.0
    %1605 = vmatprep.subr.mxu0 0.0
    %1606 = vmatpush1.msra.mxu0 0.0
    %1607 = vmatprep.subr.mxu0 0.0
    %1608 = vmatpush1.msra.mxu0 0.0
    %1609 = vmatprep.subr.mxu0 0.0
    %1610 = vmatpush1.msra.mxu0 0.0
    %1611 = vmatprep.subr.mxu0 0.0
    %1612 = vmatpush1.msra.mxu0 0.0
    %1613 = vmatprep.mubr.f32.mxu0 0.0
    %1614 = vmatmul.mubr.f32.gmra.mrb[0].mxu0 %v1471
    %v1615 = vpop.f32.mrb[0].mxu0
    %v1616 = vadd.f32 0.0, %v1615
    %v1617 = vpop.f32.mrb[0].mxu0
    %1618 = vdwg.mxu0
    %v1619 = vadd.f32 %v1475, %v1545
    %v1620 = vxor.u32 %v1619, 2147483648
    %v1621 = vmul.f32 %v1620, 1.442695
    %v1622 = vpow.pop %v1621
    %v1623 = vadd.f32 %v1622, 1.0
    %v1624 = vrcp.pop %v1623
    %v1625 = vmul.f32 1.0, %v1624
    %v1626 = vadd.f32 %v1476, %v1547
    %v1627 = vxor.u32 %v1626, 2147483648
    %v1628 = vmul.f32 %v1627, 1.442695
    %v1629 = vpow.pop %v1628
    %v1630 = vadd.f32 %v1629, 1.0
    %v1631 = vrcp.pop %v1630
    %v1632 = vmul.f32 1.0, %v1631
    %v1633 = vadd.f32 %v1616, %v618
    %v1634 = vmul.f32 %v1625, %v1633
    %v1635 = vadd.f32 %v1477, %v1634
    %v1636 = vtanh.pop %v1635
    %v1637 = vsub.f32 1.0, %v1632
    %v1638 = vmul.f32 %v1637, %v1636
    %v1639 = vmul.f32 %v1632, %v1471
    %v1640 = vadd.f32 %v1638, %v1639
    %s1641 = scalar_lea.vmem [#allocation10], 48
    %1642 = vst [vmem:[%s1641] sm:$0xff] %v1640
    %s1643 = scalar_lea.vmem [#allocation2], 168
    %v1644 = vld [vmem:[%s1643] sm:$0xff]
    %v1645 = vld [vmem:[%s1643 + $0x8] sm:$0xff]
    %v1646 = vld [vmem:[%s1643 + $0x10] sm:$0xff]
    %1647 = vmatprep.subr.mxu0 %v407
    %1648 = vmatpush1.msra.mxu0 %v406
    %1649 = vmatprep.subr.mxu0 %v410
    %1650 = vmatpush1.msra.mxu0 %v409
    %1651 = vmatprep.subr.mxu0 %v413
    %1652 = vmatpush1.msra.mxu0 %v412
    %1653 = vmatprep.subr.mxu0 %v416
    %1654 = vmatpush1.msra.mxu0 %v415
    %1655 = vmatprep.subr.mxu0 %v419
    %1656 = vmatpush1.msra.mxu0 %v418
    %1657 = vmatprep.subr.mxu0 %v422
    %1658 = vmatpush1.msra.mxu0 %v421
    %1659 = vmatprep.subr.mxu0 %v425
    %1660 = vmatpush1.msra.mxu0 %v424
    %1661 = vmatprep.subr.mxu0 %v428
    %1662 = vmatpush1.msra.mxu0 %v427
    %1663 = vmatprep.subr.mxu0 %v431
    %1664 = vmatpush1.msra.mxu0 %v430
    %1665 = vmatprep.subr.mxu0 %v434
    %1666 = vmatpush1.msra.mxu0 %v433
    %1667 = vmatprep.subr.mxu0 %v437
    %1668 = vmatpush1.msra.mxu0 %v436
    %1669 = vmatprep.subr.mxu0 %v440
    %1670 = vmatpush1.msra.mxu0 %v439
    %1671 = vmatprep.subr.mxu0 %v443
    %1672 = vmatpush1.msra.mxu0 %v442
    %1673 = vmatprep.subr.mxu0 %v446
    %1674 = vmatpush1.msra.mxu0 %v445
    %1675 = vmatprep.subr.mxu0 %v449
    %1676 = vmatpush1.msra.mxu0 %v448
    %1677 = vmatprep.subr.mxu0 %v452
    %1678 = vmatpush1.msra.mxu0 %v451
    %1679 = vmatprep.subr.mxu0 0.0
    %1680 = vmatpush1.msra.mxu0 0.0
    %1681 = vmatprep.subr.mxu0 0.0
    %1682 = vmatpush1.msra.mxu0 0.0
    %1683 = vmatprep.subr.mxu0 0.0
    %1684 = vmatpush1.msra.mxu0 0.0
    %1685 = vmatprep.subr.mxu0 0.0
    %1686 = vmatpush1.msra.mxu0 0.0
    %1687 = vmatprep.subr.mxu0 0.0
    %1688 = vmatpush1.msra.mxu0 0.0
    %1689 = vmatprep.subr.mxu0 0.0
    %1690 = vmatpush1.msra.mxu0 0.0
    %1691 = vmatprep.subr.mxu0 0.0
    %1692 = vmatpush1.msra.mxu0 0.0
    %1693 = vmatprep.subr.mxu0 0.0
    %1694 = vmatpush1.msra.mxu0 0.0
    %1695 = vmatprep.subr.mxu0 0.0
    %1696 = vmatpush1.msra.mxu0 0.0
    %1697 = vmatprep.subr.mxu0 0.0
    %1698 = vmatpush1.msra.mxu0 0.0
    %1699 = vmatprep.subr.mxu0 0.0
    %1700 = vmatpush1.msra.mxu0 0.0
    %1701 = vmatprep.subr.mxu0 0.0
    %1702 = vmatpush1.msra.mxu0 0.0
    %1703 = vmatprep.subr.mxu0 0.0
    %1704 = vmatpush1.msra.mxu0 0.0
    %1705 = vmatprep.subr.mxu0 0.0
    %1706 = vmatpush1.msra.mxu0 0.0
    %1707 = vmatprep.subr.mxu0 0.0
    %1708 = vmatpush1.msra.mxu0 0.0
    %1709 = vmatprep.subr.mxu0 0.0
    %1710 = vmatpush1.msra.mxu0 0.0
    %1711 = vmatprep.mubr.f32.mxu0 0.0
    %1712 = vmatmul.mubr.f32.gmra.mrb[0].mxu0 %v1640
    %v1713 = vpop.f32.mrb[0].mxu0
    %v1714 = vadd.f32 0.0, %v1713
    %v1715 = vpop.f32.mrb[0].mxu0
    %v1716 = vadd.f32 0.0, %v1715
    %1717 = vdwg.mxu0
    %1718 = vmatprep.subr.mxu0 0.0
    %1719 = vmatpush1.msra.mxu0 %v408
    %1720 = vmatprep.subr.mxu0 0.0
    %1721 = vmatpush1.msra.mxu0 %v411
    %1722 = vmatprep.subr.mxu0 0.0
    %1723 = vmatpush1.msra.mxu0 %v414
    %1724 = vmatprep.subr.mxu0 0.0
    %1725 = vmatpush1.msra.mxu0 %v417
    %1726 = vmatprep.subr.mxu0 0.0
    %1727 = vmatpush1.msra.mxu0 %v420
    %1728 = vmatprep.subr.mxu0 0.0
    %1729 = vmatpush1.msra.mxu0 %v423
    %1730 = vmatprep.subr.mxu0 0.0
    %1731 = vmatpush1.msra.mxu0 %v426
    %1732 = vmatprep.subr.mxu0 0.0
    %1733 = vmatpush1.msra.mxu0 %v429
    %1734 = vmatprep.subr.mxu0 0.0
    %1735 = vmatpush1.msra.mxu0 %v432
    %1736 = vmatprep.subr.mxu0 0.0
    %1737 = vmatpush1.msra.mxu0 %v435
    %1738 = vmatprep.subr.mxu0 0.0
    %1739 = vmatpush1.msra.mxu0 %v438
    %1740 = vmatprep.subr.mxu0 0.0
    %1741 = vmatpush1.msra.mxu0 %v441
    %1742 = vmatprep.subr.mxu0 0.0
    %1743 = vmatpush1.msra.mxu0 %v444
    %1744 = vmatprep.subr.mxu0 0.0
    %1745 = vmatpush1.msra.mxu0 %v447
    %1746 = vmatprep.subr.mxu0 0.0
    %1747 = vmatpush1.msra.mxu0 %v450
    %1748 = vmatprep.subr.mxu0 0.0
    %1749 = vmatpush1.msra.mxu0 %v453
    %1750 = vmatprep.subr.mxu0 0.0
    %1751 = vmatpush1.msra.mxu0 0.0
    %1752 = vmatprep.subr.mxu0 0.0
    %1753 = vmatpush1.msra.mxu0 0.0
    %1754 = vmatprep.subr.mxu0 0.0
    %1755 = vmatpush1.msra.mxu0 0.0
    %1756 = vmatprep.subr.mxu0 0.0
    %1757 = vmatpush1.msra.mxu0 0.0
    %1758 = vmatprep.subr.mxu0 0.0
    %1759 = vmatpush1.msra.mxu0 0.0
    %1760 = vmatprep.subr.mxu0 0.0
    %1761 = vmatpush1.msra.mxu0 0.0
    %1762 = vmatprep.subr.mxu0 0.0
    %1763 = vmatpush1.msra.mxu0 0.0
    %1764 = vmatprep.subr.mxu0 0.0
    %1765 = vmatpush1.msra.mxu0 0.0
    %1766 = vmatprep.subr.mxu0 0.0
    %1767 = vmatpush1.msra.mxu0 0.0
    %1768 = vmatprep.subr.mxu0 0.0
    %1769 = vmatpush1.msra.mxu0 0.0
    %1770 = vmatprep.subr.mxu0 0.0
    %1771 = vmatpush1.msra.mxu0 0.0
    %1772 = vmatprep.subr.mxu0 0.0
    %1773 = vmatpush1.msra.mxu0 0.0
    %1774 = vmatprep.subr.mxu0 0.0
    %1775 = vmatpush1.msra.mxu0 0.0
    %1776 = vmatprep.subr.mxu0 0.0
    %1777 = vmatpush1.msra.mxu0 0.0
    %1778 = vmatprep.subr.mxu0 0.0
    %1779 = vmatpush1.msra.mxu0 0.0
    %1780 = vmatprep.subr.mxu0 0.0
    %1781 = vmatpush1.msra.mxu0 0.0
    %1782 = vmatprep.mubr.f32.mxu0 0.0
    %1783 = vmatmul.mubr.f32.gmra.mrb[0].mxu0 %v1640
    %v1784 = vpop.f32.mrb[0].mxu0
    %v1785 = vadd.f32 0.0, %v1784
    %v1786 = vpop.f32.mrb[0].mxu0
    %1787 = vdwg.mxu0
    %v1788 = vadd.f32 %v1644, %v1714
    %v1789 = vxor.u32 %v1788, 2147483648
    %v1790 = vmul.f32 %v1789, 1.442695
    %v1791 = vpow.pop %v1790
    %v1792 = vadd.f32 %v1791, 1.0
    %v1793 = vrcp.pop %v1792
    %v1794 = vmul.f32 1.0, %v1793
    %v1795 = vadd.f32 %v1645, %v1716
    %v1796 = vxor.u32 %v1795, 2147483648
    %v1797 = vmul.f32 %v1796, 1.442695
    %v1798 = vpow.pop %v1797
    %v1799 = vadd.f32 %v1798, 1.0
    %v1800 = vrcp.pop %v1799
    %v1801 = vmul.f32 1.0, %v1800
    %v1802 = vadd.f32 %v1785, %v618
    %v1803 = vmul.f32 %v1794, %v1802
    %v1804 = vadd.f32 %v1646, %v1803
    %v1805 = vtanh.pop %v1804
    %v1806 = vsub.f32 1.0, %v1801
    %v1807 = vmul.f32 %v1806, %v1805
    %v1808 = vmul.f32 %v1801, %v1640
    %v1809 = vadd.f32 %v1807, %v1808
    %s1810 = scalar_lea.vmem [#allocation10], 56
    %1811 = vst [vmem:[%s1810] sm:$0xff] %v1809
    %1812 = vst [vmem:[#allocation3] sm:$0xff] %v1809
    // Predicated region
    $region38: #{tpu_custom_call.1} parent=1 // pred_check
      _
    $region39: #{tpu_custom_call.1} parent=1 // pred_check_branch
      %1814 = sbr.rel (0) target = $region41
    $region40: #{tpu_custom_call.1} parent=1 // pred_region
      %s1816 = ssub.s32 1024, 1024
      %1817 = vsyncadd [#allocation6], %s1816
      %s1818 = sshll.u32 [#allocation10], 4
      %s1819 = int_to_ptr.vmem [resolvable:$true] %s1818
      %1824 = dma.vmem_to_hbm [thread:$0]  %s1819, 1024, %s5, [#allocation6], 128, 128, 8
    $region41: #{tpu_custom_call.1} parent=1 // pred_fallthru
      _
    // Predicated region
    $region42: #{tpu_custom_call.1} parent=1 // pred_check
      _
    $region43: #{tpu_custom_call.1} parent=1 // pred_check_branch
      %1826 = sbr.rel (0) target = $region45
    $region44: #{tpu_custom_call.1} parent=1 // pred_region
      %1827 = dma.done [#allocation6], 1024
    $region45: #{tpu_custom_call.1} parent=1 // pred_fallthru
      _
    %1828 = vsyncpa [#allocation5], 1
    %1829 = vsyncpa [#allocation8], 1
    %1830 = vsyncpa [#allocation6], 1

</llo_original>
